<compile_context>
chip_gen: v7x
topology: tpu7x:2x2x1
jax: 0.10.0
libtpu: 0.0.40
codegen_flags: <defaults>
</compile_context>

<pallas_src>
import numpy as np
import jax
import jax.numpy as jnp
from jax.experimental import pallas as pl
from jax.experimental.pallas import tpu as pltpu

# ----------------------------- configuration -------------------------------
D_MODEL = 32
N_HEADS = 4
D_HEAD = D_MODEL // N_HEADS          # 8
D_FF = 64
N_LAYERS = 2
VOCAB = 50
SEQ_LEN = 8
BATCH = 1          # PyTorch module's broadcasting only works for batch_size == 1
LN_EPS = 1e-5
MAX_POS = 64

CHUNKS = D_MODEL // D_HEAD           # 8-wide lane chunks per token row (= 4)
ROWS_PER_HEAD = SEQ_LEN // N_HEADS   # token rows per head in the buggy reshape (= 2)
N_VIRT = CHUNKS * SEQ_LEN            # total "virtual tokens" across all heads (= 32)

VMEM = pltpu.MemorySpace.VMEM


def _layer_norm(v):
    """LayerNorm over last dim, gamma=1, beta=0, eps=1e-5 (matches fresh nn.LayerNorm)."""
    mu = jnp.mean(v, axis=-1, keepdims=True)
    var = jnp.mean((v - mu) ** 2, axis=-1, keepdims=True)
    return (v - mu) * jax.lax.rsqrt(var + LN_EPS)


# --------------------------- fused encoder kernel ----------------------------
def _encoder_kernel(seq_ref, seg_ref,                       # SMEM scalar-prefetch int32[8]
                    tok_ref, segemb_ref,                    # VMEM embedding tables
                    wqkv_ref, wo_ref, w1_ref, w2_ref, b_ref,  # VMEM packed weights
                    out_ref, x_scratch):
    L, D = SEQ_LEN, D_MODEL

    # ---- embeddings: gather the 8 rows of (token+pe0) / segment tables in-kernel ----
    for t in range(L):
        row = tok_ref[seq_ref[t]] + segemb_ref[seg_ref[t]]      # [1, D] dynamic row loads
        x_scratch[pl.ds(t, 1), :] = row
    x = x_scratch[...]                                          # [L, D]

    # ---- additive attention bias, computed ONCE per call (layer-independent) ----
    # virtual row r = 8*c + t (chunk c of token t); head(r) = (r & 7) >> 1
    r_idx = jax.lax.broadcasted_iota(jnp.int32, (N_VIRT, N_VIRT), 0)
    s_idx = jax.lax.broadcasted_iota(jnp.int32, (N_VIRT, N_VIRT), 1)
    cross_head = ((r_idx & 7) >> 1) != ((s_idx & 7) >> 1)

    # Pad bias per virtual key column s: the buggy reshape makes the reference apply
    # its real-token pad mask at column index j = 4*(s&1) + (s>>3).
    s1 = jax.lax.broadcasted_iota(jnp.int32, (1, N_VIRT), 1)
    vj = 4 * (s1 & 1) + (s1 >> 3)                               # real-token index per column
    padbias = jnp.zeros((1, N_VIRT), jnp.float32)
    for j in range(L):
        pb = jnp.where(seq_ref[j] == 0, -1000000000.0, 0.0)     # masked_fill_(-1e9) value
        padbias = padbias + jnp.where(vj == j, pb, 0.0)
    # Cross-head entries are excluded entirely (exp underflows to exactly 0), so the
    # flat [32,32] softmax matches the per-head reference exactly.
    bias = jnp.where(cross_head, -1e30, 0.0) + padbias          # [32, 32]
    # TODO(synk): with a purely additive -1e9 pad bias, a row whose head is entirely
    # padding (only possible when the whole sequence is padding) would differ from
    # masked_fill_'s uniform softmax; not reachable in normal use.

    for l in range(N_LAYERS):      # unrolled: 2 layers, statically indexed weights
        wqkv = wqkv_ref[l]         # [D, 3D] columns grouped [q_c|k_c|v_c], q pre-scaled
        wo = wo_ref[l]             # [D, D]
        w1 = w1_ref[l]             # [D, D_FF]
        w2 = w2_ref[l]             # [D_FF, D]
        bl = b_ref[l]              # [4, 8, 128] pre-broadcast, lane-0 aligned biases
        bqkv = bl[0, :, 0:3 * D]
        bo = bl[1, :, 0:D]
        b1 = bl[2, :, 0:D_FF]
        b2 = bl[3, :, 0:D]

        # fused Q|K|V projection: one MXU push (scale already folded into W_Q/b_Q)
        qkv = jnp.dot(x, wqkv, preferred_element_type=jnp.float32) + bqkv    # [L, 3D]

        # Buggy row-major head split, realized as ONE chunk-major sublane stack of the
        # pre-grouped 24-lane chunks (no reshape / relayout of full tiles): virtual row
        # 8c+t holds chunk c of token t for q|k|v.
        qkv_v = jnp.concatenate(
            [qkv[:, 3 * D_HEAD * c:3 * D_HEAD * (c + 1)] for c in range(CHUNKS)],
            axis=0)                                                          # [32, 24]
        q_v = qkv_v[:, 0:D_HEAD]
        k_v = qkv_v[:, D_HEAD:2 * D_HEAD]
        v_v = qkv_v[:, 2 * D_HEAD:3 * D_HEAD]

        # Scores for all heads in one flat dot + one additive bias.
        s = jax.lax.dot_general(q_v, k_v, (((1,), (1,)), ((), ())),
                                preferred_element_type=jnp.float32) + bias   # [V, V]
        m = jnp.max(s, axis=-1, keepdims=True)
        e = jnp.exp(s - m)
        denom = jnp.sum(e, axis=-1, keepdims=True)
        attn = e * pl.reciprocal(denom, approx=False)
        ctx_v = jnp.dot(attn, v_v, preferred_element_type=jnp.float32)       # [V, Dh]

        # inverse of the buggy reshape: chunk c of token t's output = row 8c+t
        ctx = jnp.concatenate(
            [ctx_v[L * c:L * (c + 1), :] for c in range(CHUNKS)], axis=1)    # [L, D]

        attn_out = jnp.dot(ctx, wo, preferred_element_type=jnp.float32) + bo
        y = _layer_norm(attn_out + x)

        h = jnp.dot(y, w1, preferred_element_type=jnp.float32) + b1
        g = 0.5 * h * (1.0 + jax.lax.erf(h * (1.0 / float(np.sqrt(2.0)))))   # exact GELU
        ffn = jnp.dot(g, w2, preferred_element_type=jnp.float32) + b2
        x = _layer_norm(y + ffn)

    out_ref[...] = x


def fused_encoder(seq_ids, seg_ids, packed):
    grid_spec = pltpu.PrefetchScalarGridSpec(
        num_scalar_prefetch=2,
        grid=(1,),
        in_specs=[pl.BlockSpec(memory_space=VMEM)] * 7,
        out_specs=pl.BlockSpec(memory_space=VMEM),
        scratch_shapes=[pltpu.VMEM((SEQ_LEN, D_MODEL), jnp.float32)],
    )
    return pl.pallas_call(
        _encoder_kernel,
        out_shape=jax.ShapeDtypeStruct((SEQ_LEN, D_MODEL), jnp.float32),
        grid_spec=grid_spec,
        compiler_params=pltpu.CompilerParams(dimension_semantics=("arbitrary",)),
    )(seq_ids, seg_ids,
      packed['tok_pe'], packed['seg'],
      packed['wqkv'], packed['wo'], packed['w1'], packed['w2'], packed['b'])


def encoder_forward(sequence, segment_label, packed):
    """Per-call work outside the kernel: just flatten the two id vectors (B == 1)."""
    seq_ids = sequence.reshape(-1).astype(jnp.int32)
    seg_ids = segment_label.reshape(-1).astype(jnp.int32)
    out2d = fused_encoder(seq_ids, seg_ids, packed)
    return out2d[None]                                                  # [1, L, D]


# ------------------------- one-time weight packing ---------------------------
def make_positional_table(max_len, d_model):
    position = np.arange(max_len, dtype=np.float32)[:, None]
    div_term = 1.0 / np.power(10000.0, np.arange(0, d_model, 2, dtype=np.float32) / d_model)
    pe = np.zeros((max_len, d_model), dtype=np.float32)
    pe[:, 0::2] = np.sin(position * div_term)
    pe[:, 1::2] = np.cos(position * div_term)
    return jnp.asarray(pe)


def pack_params(params):
    """Input-invariant packing done ONCE at init time (never inside the jit'd forward)."""
    emb = params['emb']
    # For batch_size == 1 the module adds pe[0] to every token -> fold into token table.
    tok_pe = (emb['token'] + emb['pe'][0:1, :]).reshape(VOCAB, 1, D_MODEL)
    seg_t = emb['segment'].reshape(3, 1, D_MODEL)

    inv_sqrt_dk = 1.0 / float(np.sqrt(D_HEAD))
    # column permutation grouping chunk c of q|k|v contiguously: [q_c | k_c | v_c]
    perm = []
    for c in range(CHUNKS):
        perm += list(range(c * D_HEAD, (c + 1) * D_HEAD))
        perm += list(range(D_MODEL + c * D_HEAD, D_MODEL + (c + 1) * D_HEAD))
        perm += list(range(2 * D_MODEL + c * D_HEAD, 2 * D_MODEL + (c + 1) * D_HEAD))
    perm = np.asarray(perm)

    wqkv_l, wo_l, w1_l, w2_l, b_l = [], [], [], [], []
    for p in params['layers']:
        wq = p['wq'] * inv_sqrt_dk          # fold 1/sqrt(d_k) score scaling into W_Q / b_Q
        bq = p['bq'] * inv_sqrt_dk
        wqkv = jnp.concatenate([wq, p['wk'], p['wv']], axis=1)[:, perm]      # [D, 3D]
        bqkv = jnp.concatenate([bq, p['bk'], p['bv']], axis=1)[:, perm]      # [1, 3D]
        b = jnp.zeros((4, SEQ_LEN, 128), jnp.float32)
        b = b.at[0, :, 0:3 * D_MODEL].set(jnp.broadcast_to(bqkv, (SEQ_LEN, 3 * D_MODEL)))
        b = b.at[1, :, 0:D_MODEL].set(jnp.broadcast_to(p['bo'], (SEQ_LEN, D_MODEL)))
        b = b.at[2, :, 0:D_FF].set(jnp.broadcast_to(p['b1'], (SEQ_LEN, D_FF)))
        b = b.at[3, :, 0:D_MODEL].set(jnp.broadcast_to(p['b2'], (SEQ_LEN, D_MODEL)))
        wqkv_l.append(wqkv)
        wo_l.append(p['wo'])
        w1_l.append(p['w1'])
        w2_l.append(p['w2'])
        b_l.append(b)

    return {
        'tok_pe': tok_pe, 'seg': seg_t,
        'wqkv': jnp.stack(wqkv_l), 'wo': jnp.stack(wo_l),
        'w1': jnp.stack(w1_l), 'w2': jnp.stack(w2_l), 'b': jnp.stack(b_l),
    }


# ------------------------------ pure-JAX reference ---------------------------
def _ref_layer_norm(v):
    mu = jnp.mean(v, axis=-1, keepdims=True)
    var = jnp.mean((v - mu) ** 2, axis=-1, keepdims=True)
    return (v - mu) / jnp.sqrt(var + LN_EPS)


def ref_encoder(sequence, segment_label, params):
    B, L = sequence.shape
    mask = jnp.broadcast_to((sequence == 0)[:, None, :], (B, L, L))
    emb = params['emb']
    x = (emb['token'][sequence]
         + jnp.transpose(emb['pe'][:B][:, None, :], (1, 0, 2))
         + emb['segment'][segment_label])
    for p in params['layers']:
        residual = x
        Q = (x @ p['wq'] + p['bq']).reshape(B, N_HEADS, -1, D_HEAD)
        K = (x @ p['wk'] + p['bk']).reshape(B, N_HEADS, -1, D_HEAD)
        V = (x @ p['wv'] + p['bv']).reshape(B, N_HEADS, -1, D_HEAD)
        am = jnp.tile(mask, (1, N_HEADS, 1, 1))          # torch .repeat(1, H, 1, 1)
        scores = jnp.einsum('bhld,bhmd->bhlm', Q, K) / float(np.sqrt(D_HEAD))
        scores = jnp.where(am, -1000000000.0, scores)
        attn = jax.nn.softmax(scores, axis=-1)
        ctx = jnp.einsum('bhlm,bhmd->bhld', attn, V).reshape(B, -1, N_HEADS * D_HEAD)
        x = _ref_layer_norm(ctx @ p['wo'] + p['bo'] + residual)
        r2 = x
        h = x @ p['w1'] + p['b1']
        g = 0.5 * h * (1.0 + jax.lax.erf(h / float(np.sqrt(2.0))))
        x = _ref_layer_norm(r2 + (g @ p['w2'] + p['b2']))
    return x


# ------------------------------ parameter init -------------------------------
def init_params(key):
    ks = iter(jax.random.split(key, 64))

    def dense(kin, kout):
        w = jax.random.normal(next(ks), (kin, kout), jnp.float32) * 0.02
        b = jax.random.normal(next(ks), (1, kout), jnp.float32) * 0.02
        return w, b

    emb = {
        'token': jax.random.normal(next(ks), (VOCAB, D_MODEL), jnp.float32) * 0.02,
        'segment': jax.random.normal(next(ks), (3, D_MODEL), jnp.float32) * 0.02,
        'pe': make_positional_table(MAX_POS, D_MODEL),
    }
    layers = []
    for _ in range(N_LAYERS):
        wq, bq = dense(D_MODEL, D_MODEL)
        wk, bk = dense(D_MODEL, D_MODEL)
        wv, bv = dense(D_MODEL, D_MODEL)
        wo, bo = dense(D_MODEL, D_MODEL)
        w1, b1 = dense(D_MODEL, D_FF)
        w2, b2 = dense(D_FF, D_MODEL)
        layers.append(dict(wq=wq, bq=bq, wk=wk, bk=bk, wv=wv, bv=bv,
                           wo=wo, bo=bo, w1=w1, b1=b1, w2=w2, b2=b2))
    return {'emb': emb, 'layers': layers}


# ----------------------------------- main ------------------------------------
if __name__ == "__main__":
    key = jax.random.PRNGKey(0)
    pkey, skey, gkey = jax.random.split(key, 3)
    params = init_params(pkey)
    packed = pack_params(params)            # one-time packing, outside the jit'd forward

    sequence = jax.random.randint(skey, (BATCH, SEQ_LEN), 1, VOCAB, dtype=jnp.int32)
    sequence = sequence.at[:, -2:].set(0)   # padding tokens -> exercise the pad mask
    segment_label = jax.random.randint(gkey, (BATCH, SEQ_LEN), 0, 2, dtype=jnp.int32)

    fwd = jax.jit(encoder_forward)
    out = jax.block_until_ready(fwd(sequence, segment_label, packed))

    ref = ref_encoder(sequence, segment_label, params)
    assert out.shape == (BATCH, SEQ_LEN, D_MODEL)
    np.testing.assert_allclose(np.asarray(out), np.asarray(ref), rtol=1e-2, atol=1e-2)

    print("KERNEL_OK")
</pallas_src>

<mosaic_0001>
module attributes {stable_mosaic.version = 11 : i64} {
  func.func @_encoder_kernel(%arg0: i32, %arg1: memref<8xi32, #tpu.memory_space<smem>>, %arg2: memref<8xi32, #tpu.memory_space<smem>>, %arg3: memref<50x1x32xf32, #tpu.memory_space<vmem>>, %arg4: memref<3x1x32xf32, #tpu.memory_space<vmem>>, %arg5: memref<2x32x96xf32, #tpu.memory_space<vmem>>, %arg6: memref<2x32x32xf32, #tpu.memory_space<vmem>>, %arg7: memref<2x32x64xf32, #tpu.memory_space<vmem>>, %arg8: memref<2x64x32xf32, #tpu.memory_space<vmem>>, %arg9: memref<2x4x8x128xf32, #tpu.memory_space<vmem>>, %arg10: memref<8x32xf32, #tpu.memory_space<vmem>>, %arg11: memref<8x32xf32, #tpu.memory_space<vmem>>) attributes {dimension_semantics = [#tpu.dimension_semantics<arbitrary>], iteration_bounds = array<i64: 1>, scalar_prefetch = 2 : i64, scratch_operands = 1 : i64, tpu.core_type = #tpu.core_type<tc>, window_params = [{pipeline_mode = #tpu.pipeline_mode<synchronous>, transform_indices = @transform_0, window_bounds = array<i64: 50, 1, 32>}, {pipeline_mode = #tpu.pipeline_mode<synchronous>, transform_indices = @transform_1, window_bounds = array<i64: 3, 1, 32>}, {pipeline_mode = #tpu.pipeline_mode<synchronous>, transform_indices = @transform_2, window_bounds = array<i64: 2, 32, 96>}, {pipeline_mode = #tpu.pipeline_mode<synchronous>, transform_indices = @transform_3, window_bounds = array<i64: 2, 32, 32>}, {pipeline_mode = #tpu.pipeline_mode<synchronous>, transform_indices = @transform_4, window_bounds = array<i64: 2, 32, 64>}, {pipeline_mode = #tpu.pipeline_mode<synchronous>, transform_indices = @transform_5, window_bounds = array<i64: 2, 64, 32>}, {pipeline_mode = #tpu.pipeline_mode<synchronous>, transform_indices = @transform_6, window_bounds = array<i64: 2, 4, 8, 128>}, {pipeline_mode = #tpu.pipeline_mode<synchronous>, transform_indices = @transform_7, window_bounds = array<i64: 8, 32>}]} {
    %c0 = arith.constant 0 : index
    %0 = memref.load %arg1[%c0] : memref<8xi32, #tpu.memory_space<smem>>
    %1 = arith.index_cast %0 : i32 to index
    %c0_0 = arith.constant 0 : index
    %c0_1 = arith.constant 0 : index
    %2 = vector.load %arg3[%1, %c0_0, %c0_1] : memref<50x1x32xf32, #tpu.memory_space<vmem>>, vector<1x1x32xf32>
    %3 = vector.shape_cast %2 : vector<1x1x32xf32> to vector<1x32xf32>
    %c0_2 = arith.constant 0 : index
    %4 = memref.load %arg2[%c0_2] : memref<8xi32, #tpu.memory_space<smem>>
    %5 = arith.index_cast %4 : i32 to index
    %c0_3 = arith.constant 0 : index
    %c0_4 = arith.constant 0 : index
    %6 = vector.load %arg4[%5, %c0_3, %c0_4] : memref<3x1x32xf32, #tpu.memory_space<vmem>>, vector<1x1x32xf32>
    %7 = vector.shape_cast %6 : vector<1x1x32xf32> to vector<1x32xf32>
    %8 = arith.addf %3, %7 : vector<1x32xf32>
    %c0_5 = arith.constant 0 : index
    %c0_6 = arith.constant 0 : index
    %9 = vector.load %arg11[%c0_5, %c0_6] : memref<8x32xf32, #tpu.memory_space<vmem>>, vector<1x32xf32>
    tpu.vector_store %arg11[%c0_5, %c0_6], %8 {strides = array<i32>} : memref<8x32xf32, #tpu.memory_space<vmem>>, vector<1x32xf32>,
    %c1 = arith.constant 1 : index
    %10 = memref.load %arg1[%c1] : memref<8xi32, #tpu.memory_space<smem>>
    %11 = arith.index_cast %10 : i32 to index
    %c0_7 = arith.constant 0 : index
    %c0_8 = arith.constant 0 : index
    %12 = vector.load %arg3[%11, %c0_7, %c0_8] : memref<50x1x32xf32, #tpu.memory_space<vmem>>, vector<1x1x32xf32>
    %13 = vector.shape_cast %12 : vector<1x1x32xf32> to vector<1x32xf32>
    %c1_9 = arith.constant 1 : index
    %14 = memref.load %arg2[%c1_9] : memref<8xi32, #tpu.memory_space<smem>>
    %15 = arith.index_cast %14 : i32 to index
    %c0_10 = arith.constant 0 : index
    %c0_11 = arith.constant 0 : index
    %16 = vector.load %arg4[%15, %c0_10, %c0_11] : memref<3x1x32xf32, #tpu.memory_space<vmem>>, vector<1x1x32xf32>
    %17 = vector.shape_cast %16 : vector<1x1x32xf32> to vector<1x32xf32>
    %18 = arith.addf %13, %17 : vector<1x32xf32>
    %c1_12 = arith.constant 1 : index
    %c0_13 = arith.constant 0 : index
    %19 = vector.load %arg11[%c1_12, %c0_13] : memref<8x32xf32, #tpu.memory_space<vmem>>, vector<1x32xf32>
    tpu.vector_store %arg11[%c1_12, %c0_13], %18 {strides = array<i32>} : memref<8x32xf32, #tpu.memory_space<vmem>>, vector<1x32xf32>,
    %c2 = arith.constant 2 : index
    %20 = memref.load %arg1[%c2] : memref<8xi32, #tpu.memory_space<smem>>
    %21 = arith.index_cast %20 : i32 to index
    %c0_14 = arith.constant 0 : index
    %c0_15 = arith.constant 0 : index
    %22 = vector.load %arg3[%21, %c0_14, %c0_15] : memref<50x1x32xf32, #tpu.memory_space<vmem>>, vector<1x1x32xf32>
    %23 = vector.shape_cast %22 : vector<1x1x32xf32> to vector<1x32xf32>
    %c2_16 = arith.constant 2 : index
    %24 = memref.load %arg2[%c2_16] : memref<8xi32, #tpu.memory_space<smem>>
    %25 = arith.index_cast %24 : i32 to index
    %c0_17 = arith.constant 0 : index
    %c0_18 = arith.constant 0 : index
    %26 = vector.load %arg4[%25, %c0_17, %c0_18] : memref<3x1x32xf32, #tpu.memory_space<vmem>>, vector<1x1x32xf32>
    %27 = vector.shape_cast %26 : vector<1x1x32xf32> to vector<1x32xf32>
    %28 = arith.addf %23, %27 : vector<1x32xf32>
    %c2_19 = arith.constant 2 : index
    %c0_20 = arith.constant 0 : index
    %29 = vector.load %arg11[%c2_19, %c0_20] : memref<8x32xf32, #tpu.memory_space<vmem>>, vector<1x32xf32>
    tpu.vector_store %arg11[%c2_19, %c0_20], %28 {strides = array<i32>} : memref<8x32xf32, #tpu.memory_space<vmem>>, vector<1x32xf32>,
    %c3 = arith.constant 3 : index
    %30 = memref.load %arg1[%c3] : memref<8xi32, #tpu.memory_space<smem>>
    %31 = arith.index_cast %30 : i32 to index
    %c0_21 = arith.constant 0 : index
    %c0_22 = arith.constant 0 : index
    %32 = vector.load %arg3[%31, %c0_21, %c0_22] : memref<50x1x32xf32, #tpu.memory_space<vmem>>, vector<1x1x32xf32>
    %33 = vector.shape_cast %32 : vector<1x1x32xf32> to vector<1x32xf32>
    %c3_23 = arith.constant 3 : index
    %34 = memref.load %arg2[%c3_23] : memref<8xi32, #tpu.memory_space<smem>>
    %35 = arith.index_cast %34 : i32 to index
    %c0_24 = arith.constant 0 : index
    %c0_25 = arith.constant 0 : index
    %36 = vector.load %arg4[%35, %c0_24, %c0_25] : memref<3x1x32xf32, #tpu.memory_space<vmem>>, vector<1x1x32xf32>
    %37 = vector.shape_cast %36 : vector<1x1x32xf32> to vector<1x32xf32>
    %38 = arith.addf %33, %37 : vector<1x32xf32>
    %c3_26 = arith.constant 3 : index
    %c0_27 = arith.constant 0 : index
    %39 = vector.load %arg11[%c3_26, %c0_27] : memref<8x32xf32, #tpu.memory_space<vmem>>, vector<1x32xf32>
    tpu.vector_store %arg11[%c3_26, %c0_27], %38 {strides = array<i32>} : memref<8x32xf32, #tpu.memory_space<vmem>>, vector<1x32xf32>,
    %c4 = arith.constant 4 : index
    %40 = memref.load %arg1[%c4] : memref<8xi32, #tpu.memory_space<smem>>
    %41 = arith.index_cast %40 : i32 to index
    %c0_28 = arith.constant 0 : index
    %c0_29 = arith.constant 0 : index
    %42 = vector.load %arg3[%41, %c0_28, %c0_29] : memref<50x1x32xf32, #tpu.memory_space<vmem>>, vector<1x1x32xf32>
    %43 = vector.shape_cast %42 : vector<1x1x32xf32> to vector<1x32xf32>
    %c4_30 = arith.constant 4 : index
    %44 = memref.load %arg2[%c4_30] : memref<8xi32, #tpu.memory_space<smem>>
    %45 = arith.index_cast %44 : i32 to index
    %c0_31 = arith.constant 0 : index
    %c0_32 = arith.constant 0 : index
    %46 = vector.load %arg4[%45, %c0_31, %c0_32] : memref<3x1x32xf32, #tpu.memory_space<vmem>>, vector<1x1x32xf32>
    %47 = vector.shape_cast %46 : vector<1x1x32xf32> to vector<1x32xf32>
    %48 = arith.addf %43, %47 : vector<1x32xf32>
    %c4_33 = arith.constant 4 : index
    %c0_34 = arith.constant 0 : index
    %49 = vector.load %arg11[%c4_33, %c0_34] : memref<8x32xf32, #tpu.memory_space<vmem>>, vector<1x32xf32>
    tpu.vector_store %arg11[%c4_33, %c0_34], %48 {strides = array<i32>} : memref<8x32xf32, #tpu.memory_space<vmem>>, vector<1x32xf32>,
    %c5 = arith.constant 5 : index
    %50 = memref.load %arg1[%c5] : memref<8xi32, #tpu.memory_space<smem>>
    %51 = arith.index_cast %50 : i32 to index
    %c0_35 = arith.constant 0 : index
    %c0_36 = arith.constant 0 : index
    %52 = vector.load %arg3[%51, %c0_35, %c0_36] : memref<50x1x32xf32, #tpu.memory_space<vmem>>, vector<1x1x32xf32>
    %53 = vector.shape_cast %52 : vector<1x1x32xf32> to vector<1x32xf32>
    %c5_37 = arith.constant 5 : index
    %54 = memref.load %arg2[%c5_37] : memref<8xi32, #tpu.memory_space<smem>>
    %55 = arith.index_cast %54 : i32 to index
    %c0_38 = arith.constant 0 : index
    %c0_39 = arith.constant 0 : index
    %56 = vector.load %arg4[%55, %c0_38, %c0_39] : memref<3x1x32xf32, #tpu.memory_space<vmem>>, vector<1x1x32xf32>
    %57 = vector.shape_cast %56 : vector<1x1x32xf32> to vector<1x32xf32>
    %58 = arith.addf %53, %57 : vector<1x32xf32>
    %c5_40 = arith.constant 5 : index
    %c0_41 = arith.constant 0 : index
    %59 = vector.load %arg11[%c5_40, %c0_41] : memref<8x32xf32, #tpu.memory_space<vmem>>, vector<1x32xf32>
    tpu.vector_store %arg11[%c5_40, %c0_41], %58 {strides = array<i32>} : memref<8x32xf32, #tpu.memory_space<vmem>>, vector<1x32xf32>,
    %c6 = arith.constant 6 : index
    %60 = memref.load %arg1[%c6] : memref<8xi32, #tpu.memory_space<smem>>
    %61 = arith.index_cast %60 : i32 to index
    %c0_42 = arith.constant 0 : index
    %c0_43 = arith.constant 0 : index
    %62 = vector.load %arg3[%61, %c0_42, %c0_43] : memref<50x1x32xf32, #tpu.memory_space<vmem>>, vector<1x1x32xf32>
    %63 = vector.shape_cast %62 : vector<1x1x32xf32> to vector<1x32xf32>
    %c6_44 = arith.constant 6 : index
    %64 = memref.load %arg2[%c6_44] : memref<8xi32, #tpu.memory_space<smem>>
    %65 = arith.index_cast %64 : i32 to index
    %c0_45 = arith.constant 0 : index
    %c0_46 = arith.constant 0 : index
    %66 = vector.load %arg4[%65, %c0_45, %c0_46] : memref<3x1x32xf32, #tpu.memory_space<vmem>>, vector<1x1x32xf32>
    %67 = vector.shape_cast %66 : vector<1x1x32xf32> to vector<1x32xf32>
    %68 = arith.addf %63, %67 : vector<1x32xf32>
    %c6_47 = arith.constant 6 : index
    %c0_48 = arith.constant 0 : index
    %69 = vector.load %arg11[%c6_47, %c0_48] : memref<8x32xf32, #tpu.memory_space<vmem>>, vector<1x32xf32>
    tpu.vector_store %arg11[%c6_47, %c0_48], %68 {strides = array<i32>} : memref<8x32xf32, #tpu.memory_space<vmem>>, vector<1x32xf32>,
    %c7 = arith.constant 7 : index
    %70 = memref.load %arg1[%c7] : memref<8xi32, #tpu.memory_space<smem>>
    %71 = arith.index_cast %70 : i32 to index
    %c0_49 = arith.constant 0 : index
    %c0_50 = arith.constant 0 : index
    %72 = vector.load %arg3[%71, %c0_49, %c0_50] : memref<50x1x32xf32, #tpu.memory_space<vmem>>, vector<1x1x32xf32>
    %73 = vector.shape_cast %72 : vector<1x1x32xf32> to vector<1x32xf32>
    %c7_51 = arith.constant 7 : index
    %74 = memref.load %arg2[%c7_51] : memref<8xi32, #tpu.memory_space<smem>>
    %75 = arith.index_cast %74 : i32 to index
    %c0_52 = arith.constant 0 : index
    %c0_53 = arith.constant 0 : index
    %76 = vector.load %arg4[%75, %c0_52, %c0_53] : memref<3x1x32xf32, #tpu.memory_space<vmem>>, vector<1x1x32xf32>
    %77 = vector.shape_cast %76 : vector<1x1x32xf32> to vector<1x32xf32>
    %78 = arith.addf %73, %77 : vector<1x32xf32>
    %c7_54 = arith.constant 7 : index
    %c0_55 = arith.constant 0 : index
    %79 = vector.load %arg11[%c7_54, %c0_55] : memref<8x32xf32, #tpu.memory_space<vmem>>, vector<1x32xf32>
    tpu.vector_store %arg11[%c7_54, %c0_55], %78 {strides = array<i32>} : memref<8x32xf32, #tpu.memory_space<vmem>>, vector<1x32xf32>,
    %c0_56 = arith.constant 0 : index
    %c0_57 = arith.constant 0 : index
    %80 = vector.load %arg11[%c0_56, %c0_57] : memref<8x32xf32, #tpu.memory_space<vmem>>, vector<8x32xf32>
    %81 = tpu.iota {dimensions = array<i32: 0>} : vector<32x32xi32>
    %82 = tpu.iota {dimensions = array<i32: 1>} : vector<32x32xi32>
    %c7_i32 = arith.constant 7 : i32
    %83 = vector.broadcast %c7_i32 : i32 to vector<32x32xi32>
    %84 = arith.andi %81, %83 : vector<32x32xi32>
    %c1_i32 = arith.constant 1 : i32
    %85 = vector.broadcast %c1_i32 : i32 to vector<32x32xi32>
    %86 = arith.shrsi %84, %85 : vector<32x32xi32>
    %c7_i32_58 = arith.constant 7 : i32
    %87 = vector.broadcast %c7_i32_58 : i32 to vector<32x32xi32>
    %88 = arith.andi %82, %87 : vector<32x32xi32>
    %c1_i32_59 = arith.constant 1 : i32
    %89 = vector.broadcast %c1_i32_59 : i32 to vector<32x32xi32>
    %90 = arith.shrsi %88, %89 : vector<32x32xi32>
    %91 = arith.cmpi ne, %86, %90 : vector<32x32xi32>
    %92 = tpu.iota {dimensions = array<i32: 1>} : vector<1x32xi32>
    %c1_i32_60 = arith.constant 1 : i32
    %93 = vector.broadcast %c1_i32_60 : i32 to vector<1x32xi32>
    %94 = arith.andi %92, %93 : vector<1x32xi32>
    %c4_i32 = arith.constant 4 : i32
    %95 = vector.broadcast %c4_i32 : i32 to vector<1x32xi32>
    %96 = arith.muli %95, %94 : vector<1x32xi32>
    %c3_i32 = arith.constant 3 : i32
    %97 = vector.broadcast %c3_i32 : i32 to vector<1x32xi32>
    %98 = arith.shrsi %92, %97 : vector<1x32xi32>
    %99 = arith.addi %96, %98 : vector<1x32xi32>
    %cst = arith.constant 0.000000e+00 : f32
    %100 = vector.broadcast %cst : f32 to vector<1x32xf32>
    %c0_61 = arith.constant 0 : index
    %101 = memref.load %arg1[%c0_61] : memref<8xi32, #tpu.memory_space<smem>>
    %c0_i32 = arith.constant 0 : i32
    %102 = arith.cmpi eq, %101, %c0_i32 : i32
    %cst_62 = arith.constant -1.000000e+09 : f32
    %cst_63 = arith.constant 0.000000e+00 : f32
    %103 = arith.select %102, %cst_62, %cst_63 : f32
    %c0_i32_64 = arith.constant 0 : i32
    %104 = vector.broadcast %c0_i32_64 : i32 to vector<1x32xi32>
    %105 = arith.cmpi eq, %99, %104 : vector<1x32xi32>
    %cst_65 = arith.constant 0.000000e+00 : f32
    %106 = vector.broadcast %103 : f32 to vector<1x32xf32>
    %107 = vector.broadcast %cst_65 : f32 to vector<1x32xf32>
    %108 = arith.select %105, %106, %107 : vector<1x32xi1>, vector<1x32xf32>
    %109 = arith.addf %100, %108 : vector<1x32xf32>
    %c1_66 = arith.constant 1 : index
    %110 = memref.load %arg1[%c1_66] : memref<8xi32, #tpu.memory_space<smem>>
    %c0_i32_67 = arith.constant 0 : i32
    %111 = arith.cmpi eq, %110, %c0_i32_67 : i32
    %cst_68 = arith.constant -1.000000e+09 : f32
    %cst_69 = arith.constant 0.000000e+00 : f32
    %112 = arith.select %111, %cst_68, %cst_69 : f32
    %c1_i32_70 = arith.constant 1 : i32
    %113 = vector.broadcast %c1_i32_70 : i32 to vector<1x32xi32>
    %114 = arith.cmpi eq, %99, %113 : vector<1x32xi32>
    %cst_71 = arith.constant 0.000000e+00 : f32
    %115 = vector.broadcast %112 : f32 to vector<1x32xf32>
    %116 = vector.broadcast %cst_71 : f32 to vector<1x32xf32>
    %117 = arith.select %114, %115, %116 : vector<1x32xi1>, vector<1x32xf32>
    %118 = arith.addf %109, %117 : vector<1x32xf32>
    %c2_72 = arith.constant 2 : index
    %119 = memref.load %arg1[%c2_72] : memref<8xi32, #tpu.memory_space<smem>>
    %c0_i32_73 = arith.constant 0 : i32
    %120 = arith.cmpi eq, %119, %c0_i32_73 : i32
    %cst_74 = arith.constant -1.000000e+09 : f32
    %cst_75 = arith.constant 0.000000e+00 : f32
    %121 = arith.select %120, %cst_74, %cst_75 : f32
    %c2_i32 = arith.constant 2 : i32
    %122 = vector.broadcast %c2_i32 : i32 to vector<1x32xi32>
    %123 = arith.cmpi eq, %99, %122 : vector<1x32xi32>
    %cst_76 = arith.constant 0.000000e+00 : f32
    %124 = vector.broadcast %121 : f32 to vector<1x32xf32>
    %125 = vector.broadcast %cst_76 : f32 to vector<1x32xf32>
    %126 = arith.select %123, %124, %125 : vector<1x32xi1>, vector<1x32xf32>
    %127 = arith.addf %118, %126 : vector<1x32xf32>
    %c3_77 = arith.constant 3 : index
    %128 = memref.load %arg1[%c3_77] : memref<8xi32, #tpu.memory_space<smem>>
    %c0_i32_78 = arith.constant 0 : i32
    %129 = arith.cmpi eq, %128, %c0_i32_78 : i32
    %cst_79 = arith.constant -1.000000e+09 : f32
    %cst_80 = arith.constant 0.000000e+00 : f32
    %130 = arith.select %129, %cst_79, %cst_80 : f32
    %c3_i32_81 = arith.constant 3 : i32
    %131 = vector.broadcast %c3_i32_81 : i32 to vector<1x32xi32>
    %132 = arith.cmpi eq, %99, %131 : vector<1x32xi32>
    %cst_82 = arith.constant 0.000000e+00 : f32
    %133 = vector.broadcast %130 : f32 to vector<1x32xf32>
    %134 = vector.broadcast %cst_82 : f32 to vector<1x32xf32>
    %135 = arith.select %132, %133, %134 : vector<1x32xi1>, vector<1x32xf32>
    %136 = arith.addf %127, %135 : vector<1x32xf32>
    %c4_83 = arith.constant 4 : index
    %137 = memref.load %arg1[%c4_83] : memref<8xi32, #tpu.memory_space<smem>>
    %c0_i32_84 = arith.constant 0 : i32
    %138 = arith.cmpi eq, %137, %c0_i32_84 : i32
    %cst_85 = arith.constant -1.000000e+09 : f32
    %cst_86 = arith.constant 0.000000e+00 : f32
    %139 = arith.select %138, %cst_85, %cst_86 : f32
    %c4_i32_87 = arith.constant 4 : i32
    %140 = vector.broadcast %c4_i32_87 : i32 to vector<1x32xi32>
    %141 = arith.cmpi eq, %99, %140 : vector<1x32xi32>
    %cst_88 = arith.constant 0.000000e+00 : f32
    %142 = vector.broadcast %139 : f32 to vector<1x32xf32>
    %143 = vector.broadcast %cst_88 : f32 to vector<1x32xf32>
    %144 = arith.select %141, %142, %143 : vector<1x32xi1>, vector<1x32xf32>
    %145 = arith.addf %136, %144 : vector<1x32xf32>
    %c5_89 = arith.constant 5 : index
    %146 = memref.load %arg1[%c5_89] : memref<8xi32, #tpu.memory_space<smem>>
    %c0_i32_90 = arith.constant 0 : i32
    %147 = arith.cmpi eq, %146, %c0_i32_90 : i32
    %cst_91 = arith.constant -1.000000e+09 : f32
    %cst_92 = arith.constant 0.000000e+00 : f32
    %148 = arith.select %147, %cst_91, %cst_92 : f32
    %c5_i32 = arith.constant 5 : i32
    %149 = vector.broadcast %c5_i32 : i32 to vector<1x32xi32>
    %150 = arith.cmpi eq, %99, %149 : vector<1x32xi32>
    %cst_93 = arith.constant 0.000000e+00 : f32
    %151 = vector.broadcast %148 : f32 to vector<1x32xf32>
    %152 = vector.broadcast %cst_93 : f32 to vector<1x32xf32>
    %153 = arith.select %150, %151, %152 : vector<1x32xi1>, vector<1x32xf32>
    %154 = arith.addf %145, %153 : vector<1x32xf32>
    %c6_94 = arith.constant 6 : index
    %155 = memref.load %arg1[%c6_94] : memref<8xi32, #tpu.memory_space<smem>>
    %c0_i32_95 = arith.constant 0 : i32
    %156 = arith.cmpi eq, %155, %c0_i32_95 : i32
    %cst_96 = arith.constant -1.000000e+09 : f32
    %cst_97 = arith.constant 0.000000e+00 : f32
    %157 = arith.select %156, %cst_96, %cst_97 : f32
    %c6_i32 = arith.constant 6 : i32
    %158 = vector.broadcast %c6_i32 : i32 to vector<1x32xi32>
    %159 = arith.cmpi eq, %99, %158 : vector<1x32xi32>
    %cst_98 = arith.constant 0.000000e+00 : f32
    %160 = vector.broadcast %157 : f32 to vector<1x32xf32>
    %161 = vector.broadcast %cst_98 : f32 to vector<1x32xf32>
    %162 = arith.select %159, %160, %161 : vector<1x32xi1>, vector<1x32xf32>
    %163 = arith.addf %154, %162 : vector<1x32xf32>
    %c7_99 = arith.constant 7 : index
    %164 = memref.load %arg1[%c7_99] : memref<8xi32, #tpu.memory_space<smem>>
    %c0_i32_100 = arith.constant 0 : i32
    %165 = arith.cmpi eq, %164, %c0_i32_100 : i32
    %cst_101 = arith.constant -1.000000e+09 : f32
    %cst_102 = arith.constant 0.000000e+00 : f32
    %166 = arith.select %165, %cst_101, %cst_102 : f32
    %c7_i32_103 = arith.constant 7 : i32
    %167 = vector.broadcast %c7_i32_103 : i32 to vector<1x32xi32>
    %168 = arith.cmpi eq, %99, %167 : vector<1x32xi32>
    %cst_104 = arith.constant 0.000000e+00 : f32
    %169 = vector.broadcast %166 : f32 to vector<1x32xf32>
    %170 = vector.broadcast %cst_104 : f32 to vector<1x32xf32>
    %171 = arith.select %168, %169, %170 : vector<1x32xi1>, vector<1x32xf32>
    %172 = arith.addf %163, %171 : vector<1x32xf32>
    %cst_105 = arith.constant -1.000000e+30 : f32
    %cst_106 = arith.constant 0.000000e+00 : f32
    %173 = vector.broadcast %cst_105 : f32 to vector<32x32xf32>
    %174 = vector.broadcast %cst_106 : f32 to vector<32x32xf32>
    %175 = arith.select %91, %173, %174 : vector<32x32xi1>, vector<32x32xf32>
    %176 = vector.broadcast %172 : vector<1x32xf32> to vector<32x32xf32>
    %177 = arith.addf %175, %176 : vector<32x32xf32>
    %c0_107 = arith.constant 0 : index
    %c0_108 = arith.constant 0 : index
    %c0_109 = arith.constant 0 : index
    %178 = vector.load %arg5[%c0_107, %c0_108, %c0_109] : memref<2x32x96xf32, #tpu.memory_space<vmem>>, vector<1x32x96xf32>
    %179 = vector.shape_cast %178 : vector<1x32x96xf32> to vector<32x96xf32>
    %c0_110 = arith.constant 0 : index
    %c0_111 = arith.constant 0 : index
    %c0_112 = arith.constant 0 : index
    %180 = vector.load %arg6[%c0_110, %c0_111, %c0_112] : memref<2x32x32xf32, #tpu.memory_space<vmem>>, vector<1x32x32xf32>
    %181 = vector.shape_cast %180 : vector<1x32x32xf32> to vector<32x32xf32>
    %c0_113 = arith.constant 0 : index
    %c0_114 = arith.constant 0 : index
    %c0_115 = arith.constant 0 : index
    %182 = vector.load %arg7[%c0_113, %c0_114, %c0_115] : memref<2x32x64xf32, #tpu.memory_space<vmem>>, vector<1x32x64xf32>
    %183 = vector.shape_cast %182 : vector<1x32x64xf32> to vector<32x64xf32>
    %c0_116 = arith.constant 0 : index
    %c0_117 = arith.constant 0 : index
    %c0_118 = arith.constant 0 : index
    %184 = vector.load %arg8[%c0_116, %c0_117, %c0_118] : memref<2x64x32xf32, #tpu.memory_space<vmem>>, vector<1x64x32xf32>
    %185 = vector.shape_cast %184 : vector<1x64x32xf32> to vector<64x32xf32>
    %c0_119 = arith.constant 0 : index
    %c0_120 = arith.constant 0 : index
    %c0_121 = arith.constant 0 : index
    %c0_122 = arith.constant 0 : index
    %186 = vector.load %arg9[%c0_119, %c0_120, %c0_121, %c0_122] : memref<2x4x8x128xf32, #tpu.memory_space<vmem>>, vector<1x4x8x128xf32>
    %187 = vector.shape_cast %186 : vector<1x4x8x128xf32> to vector<4x8x128xf32>
    %188 = vector.extract_strided_slice %187 {offsets = [0, 0, 0], sizes = [1, 8, 96], strides = [1, 1, 1]} : vector<4x8x128xf32> to vector<1x8x96xf32>
    %189 = vector.shape_cast %188 : vector<1x8x96xf32> to vector<8x96xf32>
    %190 = vector.extract_strided_slice %187 {offsets = [1, 0, 0], sizes = [1, 8, 32], strides = [1, 1, 1]} : vector<4x8x128xf32> to vector<1x8x32xf32>
    %191 = vector.shape_cast %190 : vector<1x8x32xf32> to vector<8x32xf32>
    %192 = vector.extract_strided_slice %187 {offsets = [2, 0, 0], sizes = [1, 8, 64], strides = [1, 1, 1]} : vector<4x8x128xf32> to vector<1x8x64xf32>
    %193 = vector.shape_cast %192 : vector<1x8x64xf32> to vector<8x64xf32>
    %194 = vector.extract_strided_slice %187 {offsets = [3, 0, 0], sizes = [1, 8, 32], strides = [1, 1, 1]} : vector<4x8x128xf32> to vector<1x8x32xf32>
    %195 = vector.shape_cast %194 : vector<1x8x32xf32> to vector<8x32xf32>
    %cst_123 = arith.constant dense<0.000000e+00> : vector<8x96xf32>
    %196 = tpu.matmul %80, %179, %cst_123 {dimension_numbers = #tpu.dot_dimension_numbers<[1], [0], [0], [1], [0, 0, 1, 1], [], []>} : vector<8x32xf32>, vector<32x96xf32>, vector<8x96xf32> -> vector<8x96xf32>
    %197 = arith.addf %196, %189 : vector<8x96xf32>
    %198 = vector.extract_strided_slice %197 {offsets = [0, 0], sizes = [8, 24], strides = [1, 1]} : vector<8x96xf32> to vector<8x24xf32>
    %199 = vector.extract_strided_slice %197 {offsets = [0, 24], sizes = [8, 24], strides = [1, 1]} : vector<8x96xf32> to vector<8x24xf32>
    %200 = vector.extract_strided_slice %197 {offsets = [0, 48], sizes = [8, 24], strides = [1, 1]} : vector<8x96xf32> to vector<8x24xf32>
    %201 = vector.extract_strided_slice %197 {offsets = [0, 72], sizes = [8, 24], strides = [1, 1]} : vector<8x96xf32> to vector<8x24xf32>
    %202 = tpu.concatenate %198, %199, %200, %201 in 0 : vector<8x24xf32>, vector<8x24xf32>, vector<8x24xf32>, vector<8x24xf32> -> vector<32x24xf32>
    %203 = vector.extract_strided_slice %202 {offsets = [0, 0], sizes = [32, 8], strides = [1, 1]} : vector<32x24xf32> to vector<32x8xf32>
    %204 = vector.extract_strided_slice %202 {offsets = [0, 8], sizes = [32, 8], strides = [1, 1]} : vector<32x24xf32> to vector<32x8xf32>
    %205 = vector.extract_strided_slice %202 {offsets = [0, 16], sizes = [32, 8], strides = [1, 1]} : vector<32x24xf32> to vector<32x8xf32>
    %cst_124 = arith.constant dense<0.000000e+00> : vector<32x32xf32>
    %206 = tpu.matmul %203, %204, %cst_124 {dimension_numbers = #tpu.dot_dimension_numbers<[1], [1], [0], [0], [0, 0, 1, 0], [], []>} : vector<32x8xf32>, vector<32x8xf32>, vector<32x32xf32> -> vector<32x32xf32>
    %207 = arith.addf %206, %177 : vector<32x32xf32>
    %cst_125 = arith.constant dense<0xFF800000> : vector<32xf32>
    %208 = vector.multi_reduction <maximumf>, %207, %cst_125 [1] : vector<32x32xf32> to vector<32xf32>
    %209 = vector.shape_cast %208 : vector<32xf32> to vector<32x1xf32>
    %210 = vector.broadcast %209 : vector<32x1xf32> to vector<32x32xf32>
    %211 = arith.subf %207, %210 : vector<32x32xf32>
    %212 = math.exp %211 : vector<32x32xf32>
    %cst_126 = arith.constant dense<0.000000e+00> : vector<32xf32>
    %213 = vector.multi_reduction <add>, %212, %cst_126 [1] : vector<32x32xf32> to vector<32xf32>
    %214 = vector.shape_cast %213 : vector<32xf32> to vector<32x1xf32>
    %215 = tpu.reciprocal %214 : vector<32x1xf32> -> vector<32x1xf32>
    %216 = vector.broadcast %215 : vector<32x1xf32> to vector<32x32xf32>
    %217 = arith.mulf %212, %216 : vector<32x32xf32>
    %cst_127 = arith.constant dense<0.000000e+00> : vector<32x8xf32>
    %218 = tpu.matmul %217, %205, %cst_127 {dimension_numbers = #tpu.dot_dimension_numbers<[1], [0], [0], [1], [0, 0, 1, 1], [], []>} : vector<32x32xf32>, vector<32x8xf32>, vector<32x8xf32> -> vector<32x8xf32>
    %219 = vector.extract_strided_slice %218 {offsets = [0, 0], sizes = [8, 8], strides = [1, 1]} : vector<32x8xf32> to vector<8x8xf32>
    %220 = vector.extract_strided_slice %218 {offsets = [8, 0], sizes = [8, 8], strides = [1, 1]} : vector<32x8xf32> to vector<8x8xf32>
    %221 = vector.extract_strided_slice %218 {offsets = [16, 0], sizes = [8, 8], strides = [1, 1]} : vector<32x8xf32> to vector<8x8xf32>
    %222 = vector.extract_strided_slice %218 {offsets = [24, 0], sizes = [8, 8], strides = [1, 1]} : vector<32x8xf32> to vector<8x8xf32>
    %223 = tpu.concatenate %219, %220, %221, %222 in 1 : vector<8x8xf32>, vector<8x8xf32>, vector<8x8xf32>, vector<8x8xf32> -> vector<8x32xf32>
    %cst_128 = arith.constant dense<0.000000e+00> : vector<8x32xf32>
    %224 = tpu.matmul %223, %181, %cst_128 {dimension_numbers = #tpu.dot_dimension_numbers<[1], [0], [0], [1], [0, 0, 1, 1], [], []>} : vector<8x32xf32>, vector<32x32xf32>, vector<8x32xf32> -> vector<8x32xf32>
    %225 = arith.addf %224, %191 : vector<8x32xf32>
    %226 = arith.addf %225, %80 : vector<8x32xf32>
    %cst_129 = arith.constant dense<0.000000e+00> : vector<8xf32>
    %227 = vector.multi_reduction <add>, %226, %cst_129 [1] : vector<8x32xf32> to vector<8xf32>
    %228 = vector.shape_cast %227 : vector<8xf32> to vector<8x1xf32>
    %cst_130 = arith.constant 3.200000e+01 : f32
    %229 = vector.broadcast %cst_130 : f32 to vector<8x1xf32>
    %230 = arith.divf %228, %229 : vector<8x1xf32>
    %231 = vector.broadcast %230 : vector<8x1xf32> to vector<8x32xf32>
    %232 = arith.subf %226, %231 : vector<8x32xf32>
    %233 = arith.mulf %232, %232 : vector<8x32xf32>
    %cst_131 = arith.constant dense<0.000000e+00> : vector<8xf32>
    %234 = vector.multi_reduction <add>, %233, %cst_131 [1] : vector<8x32xf32> to vector<8xf32>
    %235 = vector.shape_cast %234 : vector<8xf32> to vector<8x1xf32>
    %cst_132 = arith.constant 3.200000e+01 : f32
    %236 = vector.broadcast %cst_132 : f32 to vector<8x1xf32>
    %237 = arith.divf %235, %236 : vector<8x1xf32>
    %238 = vector.broadcast %230 : vector<8x1xf32> to vector<8x32xf32>
    %239 = arith.subf %226, %238 : vector<8x32xf32>
    %cst_133 = arith.constant 9.99999974E-6 : f32
    %240 = vector.broadcast %cst_133 : f32 to vector<8x1xf32>
    %241 = arith.addf %237, %240 : vector<8x1xf32>
    %242 = math.rsqrt %241 : vector<8x1xf32>
    %243 = vector.broadcast %242 : vector<8x1xf32> to vector<8x32xf32>
    %244 = arith.mulf %239, %243 : vector<8x32xf32>
    %cst_134 = arith.constant dense<0.000000e+00> : vector<8x64xf32>
    %245 = tpu.matmul %244, %183, %cst_134 {dimension_numbers = #tpu.dot_dimension_numbers<[1], [0], [0], [1], [0, 0, 1, 1], [], []>} : vector<8x32xf32>, vector<32x64xf32>, vector<8x64xf32> -> vector<8x64xf32>
    %246 = arith.addf %245, %193 : vector<8x64xf32>
    %cst_135 = arith.constant 5.000000e-01 : f32
    %247 = vector.broadcast %cst_135 : f32 to vector<8x64xf32>
    %248 = arith.mulf %247, %246 : vector<8x64xf32>
    %cst_136 = arith.constant 0.707106769 : f32
    %249 = vector.broadcast %cst_136 : f32 to vector<8x64xf32>
    %250 = arith.mulf %246, %249 : vector<8x64xf32>
    %251 = math.erf %250 : vector<8x64xf32>
    %cst_137 = arith.constant 1.000000e+00 : f32
    %252 = vector.broadcast %cst_137 : f32 to vector<8x64xf32>
    %253 = arith.addf %252, %251 : vector<8x64xf32>
    %254 = arith.mulf %248, %253 : vector<8x64xf32>
    %cst_138 = arith.constant dense<0.000000e+00> : vector<8x32xf32>
    %255 = tpu.matmul %254, %185, %cst_138 {dimension_numbers = #tpu.dot_dimension_numbers<[1], [0], [0], [1], [0, 0, 1, 1], [], []>} : vector<8x64xf32>, vector<64x32xf32>, vector<8x32xf32> -> vector<8x32xf32>
    %256 = arith.addf %255, %195 : vector<8x32xf32>
    %257 = arith.addf %244, %256 : vector<8x32xf32>
    %cst_139 = arith.constant dense<0.000000e+00> : vector<8xf32>
    %258 = vector.multi_reduction <add>, %257, %cst_139 [1] : vector<8x32xf32> to vector<8xf32>
    %259 = vector.shape_cast %258 : vector<8xf32> to vector<8x1xf32>
    %cst_140 = arith.constant 3.200000e+01 : f32
    %260 = vector.broadcast %cst_140 : f32 to vector<8x1xf32>
    %261 = arith.divf %259, %260 : vector<8x1xf32>
    %262 = vector.broadcast %261 : vector<8x1xf32> to vector<8x32xf32>
    %263 = arith.subf %257, %262 : vector<8x32xf32>
    %264 = arith.mulf %263, %263 : vector<8x32xf32>
    %cst_141 = arith.constant dense<0.000000e+00> : vector<8xf32>
    %265 = vector.multi_reduction <add>, %264, %cst_141 [1] : vector<8x32xf32> to vector<8xf32>
    %266 = vector.shape_cast %265 : vector<8xf32> to vector<8x1xf32>
    %cst_142 = arith.constant 3.200000e+01 : f32
    %267 = vector.broadcast %cst_142 : f32 to vector<8x1xf32>
    %268 = arith.divf %266, %267 : vector<8x1xf32>
    %269 = vector.broadcast %261 : vector<8x1xf32> to vector<8x32xf32>
    %270 = arith.subf %257, %269 : vector<8x32xf32>
    %cst_143 = arith.constant 9.99999974E-6 : f32
    %271 = vector.broadcast %cst_143 : f32 to vector<8x1xf32>
    %272 = arith.addf %268, %271 : vector<8x1xf32>
    %273 = math.rsqrt %272 : vector<8x1xf32>
    %274 = vector.broadcast %273 : vector<8x1xf32> to vector<8x32xf32>
    %275 = arith.mulf %270, %274 : vector<8x32xf32>
    %c1_144 = arith.constant 1 : index
    %c0_145 = arith.constant 0 : index
    %c0_146 = arith.constant 0 : index
    %276 = vector.load %arg5[%c1_144, %c0_145, %c0_146] : memref<2x32x96xf32, #tpu.memory_space<vmem>>, vector<1x32x96xf32>
    %277 = vector.shape_cast %276 : vector<1x32x96xf32> to vector<32x96xf32>
    %c1_147 = arith.constant 1 : index
    %c0_148 = arith.constant 0 : index
    %c0_149 = arith.constant 0 : index
    %278 = vector.load %arg6[%c1_147, %c0_148, %c0_149] : memref<2x32x32xf32, #tpu.memory_space<vmem>>, vector<1x32x32xf32>
    %279 = vector.shape_cast %278 : vector<1x32x32xf32> to vector<32x32xf32>
    %c1_150 = arith.constant 1 : index
    %c0_151 = arith.constant 0 : index
    %c0_152 = arith.constant 0 : index
    %280 = vector.load %arg7[%c1_150, %c0_151, %c0_152] : memref<2x32x64xf32, #tpu.memory_space<vmem>>, vector<1x32x64xf32>
    %281 = vector.shape_cast %280 : vector<1x32x64xf32> to vector<32x64xf32>
    %c1_153 = arith.constant 1 : index
    %c0_154 = arith.constant 0 : index
    %c0_155 = arith.constant 0 : index
    %282 = vector.load %arg8[%c1_153, %c0_154, %c0_155] : memref<2x64x32xf32, #tpu.memory_space<vmem>>, vector<1x64x32xf32>
    %283 = vector.shape_cast %282 : vector<1x64x32xf32> to vector<64x32xf32>
    %c1_156 = arith.constant 1 : index
    %c0_157 = arith.constant 0 : index
    %c0_158 = arith.constant 0 : index
    %c0_159 = arith.constant 0 : index
    %284 = vector.load %arg9[%c1_156, %c0_157, %c0_158, %c0_159] : memref<2x4x8x128xf32, #tpu.memory_space<vmem>>, vector<1x4x8x128xf32>
    %285 = vector.shape_cast %284 : vector<1x4x8x128xf32> to vector<4x8x128xf32>
    %286 = vector.extract_strided_slice %285 {offsets = [0, 0, 0], sizes = [1, 8, 96], strides = [1, 1, 1]} : vector<4x8x128xf32> to vector<1x8x96xf32>
    %287 = vector.shape_cast %286 : vector<1x8x96xf32> to vector<8x96xf32>
    %288 = vector.extract_strided_slice %285 {offsets = [1, 0, 0], sizes = [1, 8, 32], strides = [1, 1, 1]} : vector<4x8x128xf32> to vector<1x8x32xf32>
    %289 = vector.shape_cast %288 : vector<1x8x32xf32> to vector<8x32xf32>
    %290 = vector.extract_strided_slice %285 {offsets = [2, 0, 0], sizes = [1, 8, 64], strides = [1, 1, 1]} : vector<4x8x128xf32> to vector<1x8x64xf32>
    %291 = vector.shape_cast %290 : vector<1x8x64xf32> to vector<8x64xf32>
    %292 = vector.extract_strided_slice %285 {offsets = [3, 0, 0], sizes = [1, 8, 32], strides = [1, 1, 1]} : vector<4x8x128xf32> to vector<1x8x32xf32>
    %293 = vector.shape_cast %292 : vector<1x8x32xf32> to vector<8x32xf32>
    %cst_160 = arith.constant dense<0.000000e+00> : vector<8x96xf32>
    %294 = tpu.matmul %275, %277, %cst_160 {dimension_numbers = #tpu.dot_dimension_numbers<[1], [0], [0], [1], [0, 0, 1, 1], [], []>} : vector<8x32xf32>, vector<32x96xf32>, vector<8x96xf32> -> vector<8x96xf32>
    %295 = arith.addf %294, %287 : vector<8x96xf32>
    %296 = vector.extract_strided_slice %295 {offsets = [0, 0], sizes = [8, 24], strides = [1, 1]} : vector<8x96xf32> to vector<8x24xf32>
    %297 = vector.extract_strided_slice %295 {offsets = [0, 24], sizes = [8, 24], strides = [1, 1]} : vector<8x96xf32> to vector<8x24xf32>
    %298 = vector.extract_strided_slice %295 {offsets = [0, 48], sizes = [8, 24], strides = [1, 1]} : vector<8x96xf32> to vector<8x24xf32>
    %299 = vector.extract_strided_slice %295 {offsets = [0, 72], sizes = [8, 24], strides = [1, 1]} : vector<8x96xf32> to vector<8x24xf32>
    %300 = tpu.concatenate %296, %297, %298, %299 in 0 : vector<8x24xf32>, vector<8x24xf32>, vector<8x24xf32>, vector<8x24xf32> -> vector<32x24xf32>
    %301 = vector.extract_strided_slice %300 {offsets = [0, 0], sizes = [32, 8], strides = [1, 1]} : vector<32x24xf32> to vector<32x8xf32>
    %302 = vector.extract_strided_slice %300 {offsets = [0, 8], sizes = [32, 8], strides = [1, 1]} : vector<32x24xf32> to vector<32x8xf32>
    %303 = vector.extract_strided_slice %300 {offsets = [0, 16], sizes = [32, 8], strides = [1, 1]} : vector<32x24xf32> to vector<32x8xf32>
    %cst_161 = arith.constant dense<0.000000e+00> : vector<32x32xf32>
    %304 = tpu.matmul %301, %302, %cst_161 {dimension_numbers = #tpu.dot_dimension_numbers<[1], [1], [0], [0], [0, 0, 1, 0], [], []>} : vector<32x8xf32>, vector<32x8xf32>, vector<32x32xf32> -> vector<32x32xf32>
    %305 = arith.addf %304, %177 : vector<32x32xf32>
    %cst_162 = arith.constant dense<0xFF800000> : vector<32xf32>
    %306 = vector.multi_reduction <maximumf>, %305, %cst_162 [1] : vector<32x32xf32> to vector<32xf32>
    %307 = vector.shape_cast %306 : vector<32xf32> to vector<32x1xf32>
    %308 = vector.broadcast %307 : vector<32x1xf32> to vector<32x32xf32>
    %309 = arith.subf %305, %308 : vector<32x32xf32>
    %310 = math.exp %309 : vector<32x32xf32>
    %cst_163 = arith.constant dense<0.000000e+00> : vector<32xf32>
    %311 = vector.multi_reduction <add>, %310, %cst_163 [1] : vector<32x32xf32> to vector<32xf32>
    %312 = vector.shape_cast %311 : vector<32xf32> to vector<32x1xf32>
    %313 = tpu.reciprocal %312 : vector<32x1xf32> -> vector<32x1xf32>
    %314 = vector.broadcast %313 : vector<32x1xf32> to vector<32x32xf32>
    %315 = arith.mulf %310, %314 : vector<32x32xf32>
    %cst_164 = arith.constant dense<0.000000e+00> : vector<32x8xf32>
    %316 = tpu.matmul %315, %303, %cst_164 {dimension_numbers = #tpu.dot_dimension_numbers<[1], [0], [0], [1], [0, 0, 1, 1], [], []>} : vector<32x32xf32>, vector<32x8xf32>, vector<32x8xf32> -> vector<32x8xf32>
    %317 = vector.extract_strided_slice %316 {offsets = [0, 0], sizes = [8, 8], strides = [1, 1]} : vector<32x8xf32> to vector<8x8xf32>
    %318 = vector.extract_strided_slice %316 {offsets = [8, 0], sizes = [8, 8], strides = [1, 1]} : vector<32x8xf32> to vector<8x8xf32>
    %319 = vector.extract_strided_slice %316 {offsets = [16, 0], sizes = [8, 8], strides = [1, 1]} : vector<32x8xf32> to vector<8x8xf32>
    %320 = vector.extract_strided_slice %316 {offsets = [24, 0], sizes = [8, 8], strides = [1, 1]} : vector<32x8xf32> to vector<8x8xf32>
    %321 = tpu.concatenate %317, %318, %319, %320 in 1 : vector<8x8xf32>, vector<8x8xf32>, vector<8x8xf32>, vector<8x8xf32> -> vector<8x32xf32>
    %cst_165 = arith.constant dense<0.000000e+00> : vector<8x32xf32>
    %322 = tpu.matmul %321, %279, %cst_165 {dimension_numbers = #tpu.dot_dimension_numbers<[1], [0], [0], [1], [0, 0, 1, 1], [], []>} : vector<8x32xf32>, vector<32x32xf32>, vector<8x32xf32> -> vector<8x32xf32>
    %323 = arith.addf %322, %289 : vector<8x32xf32>
    %324 = arith.addf %323, %275 : vector<8x32xf32>
    %cst_166 = arith.constant dense<0.000000e+00> : vector<8xf32>
    %325 = vector.multi_reduction <add>, %324, %cst_166 [1] : vector<8x32xf32> to vector<8xf32>
    %326 = vector.shape_cast %325 : vector<8xf32> to vector<8x1xf32>
    %cst_167 = arith.constant 3.200000e+01 : f32
    %327 = vector.broadcast %cst_167 : f32 to vector<8x1xf32>
    %328 = arith.divf %326, %327 : vector<8x1xf32>
    %329 = vector.broadcast %328 : vector<8x1xf32> to vector<8x32xf32>
    %330 = arith.subf %324, %329 : vector<8x32xf32>
    %331 = arith.mulf %330, %330 : vector<8x32xf32>
    %cst_168 = arith.constant dense<0.000000e+00> : vector<8xf32>
    %332 = vector.multi_reduction <add>, %331, %cst_168 [1] : vector<8x32xf32> to vector<8xf32>
    %333 = vector.shape_cast %332 : vector<8xf32> to vector<8x1xf32>
    %cst_169 = arith.constant 3.200000e+01 : f32
    %334 = vector.broadcast %cst_169 : f32 to vector<8x1xf32>
    %335 = arith.divf %333, %334 : vector<8x1xf32>
    %336 = vector.broadcast %328 : vector<8x1xf32> to vector<8x32xf32>
    %337 = arith.subf %324, %336 : vector<8x32xf32>
    %cst_170 = arith.constant 9.99999974E-6 : f32
    %338 = vector.broadcast %cst_170 : f32 to vector<8x1xf32>
    %339 = arith.addf %335, %338 : vector<8x1xf32>
    %340 = math.rsqrt %339 : vector<8x1xf32>
    %341 = vector.broadcast %340 : vector<8x1xf32> to vector<8x32xf32>
    %342 = arith.mulf %337, %341 : vector<8x32xf32>
    %cst_171 = arith.constant dense<0.000000e+00> : vector<8x64xf32>
    %343 = tpu.matmul %342, %281, %cst_171 {dimension_numbers = #tpu.dot_dimension_numbers<[1], [0], [0], [1], [0, 0, 1, 1], [], []>} : vector<8x32xf32>, vector<32x64xf32>, vector<8x64xf32> -> vector<8x64xf32>
    %344 = arith.addf %343, %291 : vector<8x64xf32>
    %cst_172 = arith.constant 5.000000e-01 : f32
    %345 = vector.broadcast %cst_172 : f32 to vector<8x64xf32>
    %346 = arith.mulf %345, %344 : vector<8x64xf32>
    %cst_173 = arith.constant 0.707106769 : f32
    %347 = vector.broadcast %cst_173 : f32 to vector<8x64xf32>
    %348 = arith.mulf %344, %347 : vector<8x64xf32>
    %349 = math.erf %348 : vector<8x64xf32>
    %cst_174 = arith.constant 1.000000e+00 : f32
    %350 = vector.broadcast %cst_174 : f32 to vector<8x64xf32>
    %351 = arith.addf %350, %349 : vector<8x64xf32>
    %352 = arith.mulf %346, %351 : vector<8x64xf32>
    %cst_175 = arith.constant dense<0.000000e+00> : vector<8x32xf32>
    %353 = tpu.matmul %352, %283, %cst_175 {dimension_numbers = #tpu.dot_dimension_numbers<[1], [0], [0], [1], [0, 0, 1, 1], [], []>} : vector<8x64xf32>, vector<64x32xf32>, vector<8x32xf32> -> vector<8x32xf32>
    %354 = arith.addf %353, %293 : vector<8x32xf32>
    %355 = arith.addf %342, %354 : vector<8x32xf32>
    %cst_176 = arith.constant dense<0.000000e+00> : vector<8xf32>
    %356 = vector.multi_reduction <add>, %355, %cst_176 [1] : vector<8x32xf32> to vector<8xf32>
    %357 = vector.shape_cast %356 : vector<8xf32> to vector<8x1xf32>
    %cst_177 = arith.constant 3.200000e+01 : f32
    %358 = vector.broadcast %cst_177 : f32 to vector<8x1xf32>
    %359 = arith.divf %357, %358 : vector<8x1xf32>
    %360 = vector.broadcast %359 : vector<8x1xf32> to vector<8x32xf32>
    %361 = arith.subf %355, %360 : vector<8x32xf32>
    %362 = arith.mulf %361, %361 : vector<8x32xf32>
    %cst_178 = arith.constant dense<0.000000e+00> : vector<8xf32>
    %363 = vector.multi_reduction <add>, %362, %cst_178 [1] : vector<8x32xf32> to vector<8xf32>
    %364 = vector.shape_cast %363 : vector<8xf32> to vector<8x1xf32>
    %cst_179 = arith.constant 3.200000e+01 : f32
    %365 = vector.broadcast %cst_179 : f32 to vector<8x1xf32>
    %366 = arith.divf %364, %365 : vector<8x1xf32>
    %367 = vector.broadcast %359 : vector<8x1xf32> to vector<8x32xf32>
    %368 = arith.subf %355, %367 : vector<8x32xf32>
    %cst_180 = arith.constant 9.99999974E-6 : f32
    %369 = vector.broadcast %cst_180 : f32 to vector<8x1xf32>
    %370 = arith.addf %366, %369 : vector<8x1xf32>
    %371 = math.rsqrt %370 : vector<8x1xf32>
    %372 = vector.broadcast %371 : vector<8x1xf32> to vector<8x32xf32>
    %373 = arith.mulf %368, %372 : vector<8x32xf32>
    %c0_181 = arith.constant 0 : index
    %c0_182 = arith.constant 0 : index
    %374 = vector.load %arg10[%c0_181, %c0_182] : memref<8x32xf32, #tpu.memory_space<vmem>>, vector<8x32xf32>
    tpu.vector_store %arg10[%c0_181, %c0_182], %373 {strides = array<i32>} : memref<8x32xf32, #tpu.memory_space<vmem>>, vector<8x32xf32>,
    return
  }
  func.func @transform_0(%arg0: i32, %arg1: memref<8xi32, #tpu.memory_space<smem>>, %arg2: memref<8xi32, #tpu.memory_space<smem>>) -> (i32, i32, i32) {
    %c0_i32 = arith.constant 0 : i32
    %c0_i32_0 = arith.constant 0 : i32
    %c0_i32_1 = arith.constant 0 : i32
    %c0_i32_2 = arith.constant 0 : i32
    return %c0_i32, %c0_i32_0, %c0_i32_1 : i32, i32, i32
  }
  func.func @transform_1(%arg0: i32, %arg1: memref<8xi32, #tpu.memory_space<smem>>, %arg2: memref<8xi32, #tpu.memory_space<smem>>) -> (i32, i32, i32) {
    %c0_i32 = arith.constant 0 : i32
    %c0_i32_0 = arith.constant 0 : i32
    %c0_i32_1 = arith.constant 0 : i32
    %c0_i32_2 = arith.constant 0 : i32
    return %c0_i32, %c0_i32_0, %c0_i32_1 : i32, i32, i32
  }
  func.func @transform_2(%arg0: i32, %arg1: memref<8xi32, #tpu.memory_space<smem>>, %arg2: memref<8xi32, #tpu.memory_space<smem>>) -> (i32, i32, i32) {
    %c0_i32 = arith.constant 0 : i32
    %c0_i32_0 = arith.constant 0 : i32
    %c0_i32_1 = arith.constant 0 : i32
    %c0_i32_2 = arith.constant 0 : i32
    return %c0_i32, %c0_i32_0, %c0_i32_1 : i32, i32, i32
  }
  func.func @transform_3(%arg0: i32, %arg1: memref<8xi32, #tpu.memory_space<smem>>, %arg2: memref<8xi32, #tpu.memory_space<smem>>) -> (i32, i32, i32) {
    %c0_i32 = arith.constant 0 : i32
    %c0_i32_0 = arith.constant 0 : i32
    %c0_i32_1 = arith.constant 0 : i32
    %c0_i32_2 = arith.constant 0 : i32
    return %c0_i32, %c0_i32_0, %c0_i32_1 : i32, i32, i32
  }
  func.func @transform_4(%arg0: i32, %arg1: memref<8xi32, #tpu.memory_space<smem>>, %arg2: memref<8xi32, #tpu.memory_space<smem>>) -> (i32, i32, i32) {
    %c0_i32 = arith.constant 0 : i32
    %c0_i32_0 = arith.constant 0 : i32
    %c0_i32_1 = arith.constant 0 : i32
    %c0_i32_2 = arith.constant 0 : i32
    return %c0_i32, %c0_i32_0, %c0_i32_1 : i32, i32, i32
  }
  func.func @transform_5(%arg0: i32, %arg1: memref<8xi32, #tpu.memory_space<smem>>, %arg2: memref<8xi32, #tpu.memory_space<smem>>) -> (i32, i32, i32) {
    %c0_i32 = arith.constant 0 : i32
    %c0_i32_0 = arith.constant 0 : i32
    %c0_i32_1 = arith.constant 0 : i32
    %c0_i32_2 = arith.constant 0 : i32
    return %c0_i32, %c0_i32_0, %c0_i32_1 : i32, i32, i32
  }
  func.func @transform_6(%arg0: i32, %arg1: memref<8xi32, #tpu.memory_space<smem>>, %arg2: memref<8xi32, #tpu.memory_space<smem>>) -> (i32, i32, i32, i32) {
    %c0_i32 = arith.constant 0 : i32
    %c0_i32_0 = arith.constant 0 : i32
    %c0_i32_1 = arith.constant 0 : i32
    %c0_i32_2 = arith.constant 0 : i32
    %c0_i32_3 = arith.constant 0 : i32
    return %c0_i32, %c0_i32_0, %c0_i32_1, %c0_i32_2 : i32, i32, i32, i32
  }
  func.func @transform_7(%arg0: i32, %arg1: memref<8xi32, #tpu.memory_space<smem>>, %arg2: memref<8xi32, #tpu.memory_space<smem>>) -> (i32, i32) {
    %c0_i32 = arith.constant 0 : i32
    %c0_i32_0 = arith.constant 0 : i32
    %c0_i32_1 = arith.constant 0 : i32
    return %c0_i32, %c0_i32_0 : i32, i32
  }
}

</mosaic_0001>

<llo_original>
// kernel: encoder_forward.1
$region0: #{encoder_forward.1}
  #allocation0 [shape = 'u32[]', space=smem, size = 0x4, offset = 0x4, fixed_abs, tag = 'smem constant byte address 0x4 - core index']
  #allocation1 [shape = 'u32[144,128]{1,0:T(1,128)}', space=vmem, size = 0x12000, scoped, tag = 'internal scratch']
  #allocation2 [shape = 'f32[8,32]{1,0:T(8,128)}', space=vmem, size = 0x1000, scoped, tag = 'scratch operand']
  #allocation3 [shape = 's32[1]{0}', space=sflag, size = 0x4, scoped, tag = 'scoped memory for encoder_forward.1']
  #allocation4 [shape = 'u8[512]{0}', space=smem, size = 0x200, scoped, tag = 'prefetched SMEM operand 0']
  #allocation5 [shape = 'u8[512]{0}', space=smem, size = 0x200, scoped, tag = 'prefetched SMEM operand 1']
  %s0 = inlined_call_operand.vmem [shape: s32[8], index: 0, kind: input, shape index: {}]
  %s1 = inlined_call_operand.vmem [shape: s32[8], index: 1, kind: input, shape index: {}]
  %s2 = inlined_call_operand.vmem [shape: f32[50,1,32], index: 2, kind: input, shape index: {}]
  %s3 = inlined_call_operand.vmem [shape: f32[3,1,32], index: 3, kind: input, shape index: {}]
  %s4 = inlined_call_operand.vmem [shape: f32[2,32,96], index: 4, kind: input, shape index: {}]
  %s5 = inlined_call_operand.vmem [shape: f32[2,32,32], index: 5, kind: input, shape index: {}]
  %s6 = inlined_call_operand.vmem [shape: f32[2,32,64], index: 6, kind: input, shape index: {}]
  %s7 = inlined_call_operand.vmem [shape: f32[2,64,32], index: 7, kind: input, shape index: {}]
  %s8 = inlined_call_operand.hbm [shape: f32[2,4,8,128], index: 8, kind: input, shape index: {}]
  %s9 = inlined_call_operand.hbm [shape: f32[8,32], index: 9, kind: output, shape index: {}]
  %s10 = sld [smem:[#allocation0]]
  $region42: #{encoder_forward.1} parent=0
    _
  %s12 = ssub.s32 1, %s10
  %s13 = scalar_select 0, %s12, %s10
  %s14 = sshll.u32 %s0, 4
  %s15 = int_to_ptr.vmem [resolvable:$true] %s14
  %17 = dma.vmem_to_smem %s15, 16, [#allocation4], [#allocation3]
  %s18 = sshll.u32 %s1, 4
  %s19 = int_to_ptr.vmem [resolvable:$true] %s18
  %21 = dma.vmem_to_smem %s19, 16, [#allocation5], [#allocation3]
  %22 = dma.done [#allocation3], 32
  %23 = sfence
  $region1: #{encoder_forward.1} parent=0
    #allocation6 [shape = 'u8[32768]{0}', space=vmem, size = 0x8000, scoped, tag = 'input window, operand 8, single buffered']
    #allocation7 [shape = 's32[1]{0}', space=sflag, size = 0x4, scoped, tag = 'scoped memory for encoder_forward.1']
    #allocation8 [shape = 's32[1]{0}', space=sflag, size = 0x4, scoped, tag = 'scoped memory for encoder_forward.1']
    #allocation9 [shape = 'u8[4096]{0}', space=vmem, size = 0x1000, scoped, tag = 'output window, operand 0, single buffered']
    %24 = vsyncpa [#allocation7], 0
    %25 = vsyncpa [#allocation8], 0
    // Predicated region
    $region2: #{encoder_forward.1} parent=1 // pred_check
      _
    $region3: #{encoder_forward.1} parent=1 // pred_check_branch
      %27 = sbr.rel (0) target = $region5
    $region4: #{encoder_forward.1} parent=1 // pred_region
      _
    $region5: #{encoder_forward.1} parent=1 // pred_fallthru
      _
    // Predicated region
    $region6: #{encoder_forward.1} parent=1 // pred_check
      _
    $region7: #{encoder_forward.1} parent=1 // pred_check_branch
      %29 = sbr.rel (0) target = $region9
    $region8: #{encoder_forward.1} parent=1 // pred_region
      _
    $region9: #{encoder_forward.1} parent=1 // pred_fallthru
      _
    // Predicated region
    $region10: #{encoder_forward.1} parent=1 // pred_check
      _
    $region11: #{encoder_forward.1} parent=1 // pred_check_branch
      %31 = sbr.rel (0) target = $region13
    $region12: #{encoder_forward.1} parent=1 // pred_region
      _
    $region13: #{encoder_forward.1} parent=1 // pred_fallthru
      _
    // Predicated region
    $region14: #{encoder_forward.1} parent=1 // pred_check
      _
    $region15: #{encoder_forward.1} parent=1 // pred_check_branch
      %33 = sbr.rel (0) target = $region17
    $region16: #{encoder_forward.1} parent=1 // pred_region
      _
    $region17: #{encoder_forward.1} parent=1 // pred_fallthru
      _
    // Predicated region
    $region18: #{encoder_forward.1} parent=1 // pred_check
      _
    $region19: #{encoder_forward.1} parent=1 // pred_check_branch
      %35 = sbr.rel (0) target = $region21
    $region20: #{encoder_forward.1} parent=1 // pred_region
      _
    $region21: #{encoder_forward.1} parent=1 // pred_fallthru
      _
    // Predicated region
    $region22: #{encoder_forward.1} parent=1 // pred_check
      _
    $region23: #{encoder_forward.1} parent=1 // pred_check_branch
      %37 = sbr.rel (0) target = $region25
    $region24: #{encoder_forward.1} parent=1 // pred_region
      _
    $region25: #{encoder_forward.1} parent=1 // pred_fallthru
      _
    // Predicated region
    $region26: #{encoder_forward.1} parent=1 // pred_check
      _
    $region27: #{encoder_forward.1} parent=1 // pred_check_branch
      %39 = sbr.rel (0) target = $region29
    $region28: #{encoder_forward.1} parent=1 // pred_region
      %s41 = ssub.s32 1024, 1024
      %42 = vsyncadd [#allocation7], %s41
      %s43 = sshll.u32 [#allocation6], 4
      %s44 = int_to_ptr.vmem [resolvable:$true] %s43
      %49 = dma.hbm_to_vmem [thread:$0]  %s8, 1024, %s44, [#allocation7], 128, 128, 8
    $region29: #{encoder_forward.1} parent=1 // pred_fallthru
      _
    // Predicated region
    $region30: #{encoder_forward.1} parent=1 // pred_check
      _
    $region31: #{encoder_forward.1} parent=1 // pred_check_branch
      %51 = sbr.rel (0) target = $region33
    $region32: #{encoder_forward.1} parent=1 // pred_region
      %52 = dma.done [#allocation7], 1024
    $region33: #{encoder_forward.1} parent=1 // pred_fallthru
      _
    %s53 = sld [smem:[#allocation4]]
    %s54 = scalar_lea.vmem %s2, %s53
    %v55 = vld [vmem:[%s54] sm:$0x1]
    %s56 = sld [smem:[#allocation5]]
    %s57 = scalar_lea.vmem %s3, %s56
    %v58 = vld [vmem:[%s57] sm:$0x1]
    %v59 = vadd.f32 %v55, %v58
    %vm60 = vcmask 253952
    %61 = vst.msk [vmem:[#allocation2] sm:$0x1] %vm60, %v59
    %s62 = sld [smem:[#allocation4 + $0x1]]
    %s63 = scalar_lea.vmem %s2, %s62
    %v64 = vld [vmem:[%s63] sm:$0x1]
    %s65 = sld [smem:[#allocation5 + $0x1]]
    %s66 = scalar_lea.vmem %s3, %s65
    %v67 = vld [vmem:[%s66] sm:$0x1]
    %v68 = vadd.f32 %v64, %v67
    %69 = vst.msk [vmem:[#allocation2 + $0x1] sm:$0x1] %vm60, %v68
    %s70 = sld [smem:[#allocation4 + $0x2]]
    %s71 = scalar_lea.vmem %s2, %s70
    %v72 = vld [vmem:[%s71] sm:$0x1]
    %s73 = sld [smem:[#allocation5 + $0x2]]
    %s74 = scalar_lea.vmem %s3, %s73
    %v75 = vld [vmem:[%s74] sm:$0x1]
    %v76 = vadd.f32 %v72, %v75
    %77 = vst.msk [vmem:[#allocation2 + $0x2] sm:$0x1] %vm60, %v76
    %s78 = sld [smem:[#allocation4 + $0x3]]
    %s79 = scalar_lea.vmem %s2, %s78
    %v80 = vld [vmem:[%s79] sm:$0x1]
    %s81 = sld [smem:[#allocation5 + $0x3]]
    %s82 = scalar_lea.vmem %s3, %s81
    %v83 = vld [vmem:[%s82] sm:$0x1]
    %v84 = vadd.f32 %v80, %v83
    %85 = vst.msk [vmem:[#allocation2 + $0x3] sm:$0x1] %vm60, %v84
    %s86 = sld [smem:[#allocation4 + $0x4]]
    %s87 = scalar_lea.vmem %s2, %s86
    %v88 = vld [vmem:[%s87] sm:$0x1]
    %s89 = sld [smem:[#allocation5 + $0x4]]
    %s90 = scalar_lea.vmem %s3, %s89
    %v91 = vld [vmem:[%s90] sm:$0x1]
    %v92 = vadd.f32 %v88, %v91
    %93 = vst.msk [vmem:[#allocation2 + $0x4] sm:$0x1] %vm60, %v92
    %s94 = sld [smem:[#allocation4 + $0x5]]
    %s95 = scalar_lea.vmem %s2, %s94
    %v96 = vld [vmem:[%s95] sm:$0x1]
    %s97 = sld [smem:[#allocation5 + $0x5]]
    %s98 = scalar_lea.vmem %s3, %s97
    %v99 = vld [vmem:[%s98] sm:$0x1]
    %v100 = vadd.f32 %v96, %v99
    %101 = vst.msk [vmem:[#allocation2 + $0x5] sm:$0x1] %vm60, %v100
    %s102 = sld [smem:[#allocation4 + $0x6]]
    %s103 = scalar_lea.vmem %s2, %s102
    %v104 = vld [vmem:[%s103] sm:$0x1]
    %s105 = sld [smem:[#allocation5 + $0x6]]
    %s106 = scalar_lea.vmem %s3, %s105
    %v107 = vld [vmem:[%s106] sm:$0x1]
    %v108 = vadd.f32 %v104, %v107
    %109 = vst.msk [vmem:[#allocation2 + $0x6] sm:$0x1] %vm60, %v108
    %s110 = sld [smem:[#allocation4 + $0x7]]
    %s111 = scalar_lea.vmem %s2, %s110
    %v112 = vld [vmem:[%s111] sm:$0x1]
    %s113 = sld [smem:[#allocation5 + $0x7]]
    %s114 = scalar_lea.vmem %s3, %s113
    %v115 = vld [vmem:[%s114] sm:$0x1]
    %v116 = vadd.f32 %v112, %v115
    %117 = vst.msk [vmem:[#allocation2 + $0x7] sm:$0x1] %vm60, %v116
    %v118 = vld [vmem:[#allocation2] sm:$0xff]
    %v119 = vlaneseq
    %v120 = vshrl.u32 %v119, 7
    %v121 = vadd.s32 %v120, 8
    %v122 = vadd.s32 %v120, 16
    %v123 = vadd.s32 %v120, 24
    %v124 = vlaneseq
    %v125 = vand.u32 %v124, 127
    %v126 = vand.u32 %v120, 7
    %v127 = vand.u32 %v121, 7
    %v128 = vand.u32 %v122, 7
    %v129 = vand.u32 %v123, 7
    %v130 = vshra.s32 %v126, 1
    %v131 = vshra.s32 %v127, 1
    %v132 = vshra.s32 %v128, 1
    %v133 = vshra.s32 %v129, 1
    %v134 = vand.u32 %v125, 7
    %v135 = vshra.s32 %v134, 1
    %vm136 = vcmp.ne.s32.totalorder %v130, %v135
    %vm137 = vcmp.ne.s32.totalorder %v131, %v135
    %vm138 = vcmp.ne.s32.totalorder %v132, %v135
    %vm139 = vcmp.ne.s32.totalorder %v133, %v135
    %v140 = vand.u32 %v125, 1
    %v141 = vmul.u32 %v140, 4
    %v142 = vshra.s32 %v125, 3
    %v143 = vadd.s32 %v141, %v142
    %s144 = sld [smem:[#allocation4]]
    %p145 = scmp.eq.s32.totalorder %s144, 0
    %s146 = scalar_select %p145, -1e+09, 0.0
    %vm147 = vcmp.eq.s32.totalorder %v143, 0
    %v148 = vstv %s146
    %v149 = vsel %vm147, %v148, 0.0
    %v150 = vadd.f32 %v149, 0.0
    %s151 = sld [smem:[#allocation4 + $0x1]]
    %p152 = scmp.eq.s32.totalorder %s151, 0
    %s153 = scalar_select %p152, -1e+09, 0.0
    %vm154 = vcmp.eq.s32.totalorder %v143, 1
    %v155 = vstv %s153
    %v156 = vsel %vm154, %v155, 0.0
    %v157 = vadd.f32 %v150, %v156
    %s158 = sld [smem:[#allocation4 + $0x2]]
    %p159 = scmp.eq.s32.totalorder %s158, 0
    %s160 = scalar_select %p159, -1e+09, 0.0
    %vm161 = vcmp.eq.s32.totalorder %v143, 2
    %v162 = vstv %s160
    %v163 = vsel %vm161, %v162, 0.0
    %v164 = vadd.f32 %v157, %v163
    %s165 = sld [smem:[#allocation4 + $0x3]]
    %p166 = scmp.eq.s32.totalorder %s165, 0
    %s167 = scalar_select %p166, -1e+09, 0.0
    %vm168 = vcmp.eq.s32.totalorder %v143, 3
    %v169 = vstv %s167
    %v170 = vsel %vm168, %v169, 0.0
    %v171 = vadd.f32 %v164, %v170
    %s172 = sld [smem:[#allocation4 + $0x4]]
    %p173 = scmp.eq.s32.totalorder %s172, 0
    %s174 = scalar_select %p173, -1e+09, 0.0
    %vm175 = vcmp.eq.s32.totalorder %v143, 4
    %v176 = vstv %s174
    %v177 = vsel %vm175, %v176, 0.0
    %v178 = vadd.f32 %v171, %v177
    %s179 = sld [smem:[#allocation4 + $0x5]]
    %p180 = scmp.eq.s32.totalorder %s179, 0
    %s181 = scalar_select %p180, -1e+09, 0.0
    %vm182 = vcmp.eq.s32.totalorder %v143, 5
    %v183 = vstv %s181
    %v184 = vsel %vm182, %v183, 0.0
    %v185 = vadd.f32 %v178, %v184
    %s186 = sld [smem:[#allocation4 + $0x6]]
    %p187 = scmp.eq.s32.totalorder %s186, 0
    %s188 = scalar_select %p187, -1e+09, 0.0
    %vm189 = vcmp.eq.s32.totalorder %v143, 6
    %v190 = vstv %s188
    %v191 = vsel %vm189, %v190, 0.0
    %v192 = vadd.f32 %v185, %v191
    %s193 = sld [smem:[#allocation4 + $0x7]]
    %p194 = scmp.eq.s32.totalorder %s193, 0
    %s195 = scalar_select %p194, -1e+09, 0.0
    %vm196 = vcmp.eq.s32.totalorder %v143, 7
    %v197 = vstv %s195
    %v198 = vsel %vm196, %v197, 0.0
    %v199 = vadd.f32 %v192, %v198
    %v200 = vsel %vm136, -1e+30, 0.0
    %v201 = vsel %vm137, -1e+30, 0.0
    %v202 = vsel %vm138, -1e+30, 0.0
    %v203 = vsel %vm139, -1e+30, 0.0
    %v204 = vadd.f32 %v200, %v199
    %v205 = vadd.f32 %v201, %v199
    %v206 = vadd.f32 %v202, %v199
    %v207 = vadd.f32 %v203, %v199
    %v208 = vld [vmem:[%s4] sm:$0xff]
    %v209 = vld [vmem:[%s4 + $0x8] sm:$0xff]
    %v210 = vld [vmem:[%s4 + $0x10] sm:$0xff]
    %v211 = vld [vmem:[%s4 + $0x18] sm:$0xff]
    %v212 = vld [vmem:[%s5] sm:$0xff]
    %v213 = vld [vmem:[%s5 + $0x8] sm:$0xff]
    %v214 = vld [vmem:[%s5 + $0x10] sm:$0xff]
    %v215 = vld [vmem:[%s5 + $0x18] sm:$0xff]
    %v216 = vld [vmem:[%s6] sm:$0xff]
    %v217 = vld [vmem:[%s6 + $0x8] sm:$0xff]
    %v218 = vld [vmem:[%s6 + $0x10] sm:$0xff]
    %v219 = vld [vmem:[%s6 + $0x18] sm:$0xff]
    %v220 = vld [vmem:[%s7] sm:$0xff]
    %v221 = vld [vmem:[%s7 + $0x8] sm:$0xff]
    %v222 = vld [vmem:[%s7 + $0x10] sm:$0xff]
    %v223 = vld [vmem:[%s7 + $0x18] sm:$0xff]
    %v224 = vld [vmem:[%s7 + $0x20] sm:$0xff]
    %v225 = vld [vmem:[%s7 + $0x28] sm:$0xff]
    %v226 = vld [vmem:[%s7 + $0x30] sm:$0xff]
    %v227 = vld [vmem:[%s7 + $0x38] sm:$0xff]
    %v228 = vld [vmem:[#allocation6] sm:$0xff]
    %v229 = vld [vmem:[#allocation6 + $0x8] sm:$0xff]
    %v230 = vld [vmem:[#allocation6 + $0x10] sm:$0xff]
    %v231 = vld [vmem:[#allocation6 + $0x18] sm:$0xff]
    %vm232 = vcmask 261120
    %v234 = vsel %vm232, %v118, 0
    %236 = vmatprep.subr.mxu0 0.0
    %237 = vmatpush1.msra.mxu0 %v208
    %238 = vmatprep.subr.mxu0 0.0
    %239 = vmatpush1.msra.mxu0 %v209
    %240 = vmatprep.subr.mxu0 0.0
    %241 = vmatpush1.msra.mxu0 %v210
    %242 = vmatprep.subr.mxu0 0.0
    %243 = vmatpush1.msra.mxu0 %v211
    %244 = vmatprep.subr.mxu0 0.0
    %245 = vmatpush1.msra.mxu0 0.0
    %246 = vmatprep.subr.mxu0 0.0
    %247 = vmatpush1.msra.mxu0 0.0
    %248 = vmatprep.subr.mxu0 0.0
    %249 = vmatpush1.msra.mxu0 0.0
    %250 = vmatprep.subr.mxu0 0.0
    %251 = vmatpush1.msra.mxu0 0.0
    %252 = vmatprep.subr.mxu0 0.0
    %253 = vmatpush1.msra.mxu0 0.0
    %254 = vmatprep.subr.mxu0 0.0
    %255 = vmatpush1.msra.mxu0 0.0
    %256 = vmatprep.subr.mxu0 0.0
    %257 = vmatpush1.msra.mxu0 0.0
    %258 = vmatprep.subr.mxu0 0.0
    %259 = vmatpush1.msra.mxu0 0.0
    %260 = vmatprep.subr.mxu0 0.0
    %261 = vmatpush1.msra.mxu0 0.0
    %262 = vmatprep.subr.mxu0 0.0
    %263 = vmatpush1.msra.mxu0 0.0
    %264 = vmatprep.subr.mxu0 0.0
    %265 = vmatpush1.msra.mxu0 0.0
    %266 = vmatprep.subr.mxu0 0.0
    %267 = vmatpush1.msra.mxu0 0.0
    %268 = vmatprep.subr.mxu0 0.0
    %269 = vmatpush1.msra.mxu0 0.0
    %270 = vmatprep.subr.mxu0 0.0
    %271 = vmatpush1.msra.mxu0 0.0
    %272 = vmatprep.subr.mxu0 0.0
    %273 = vmatpush1.msra.mxu0 0.0
    %274 = vmatprep.subr.mxu0 0.0
    %275 = vmatpush1.msra.mxu0 0.0
    %276 = vmatprep.subr.mxu0 0.0
    %277 = vmatpush1.msra.mxu0 0.0
    %278 = vmatprep.subr.mxu0 0.0
    %279 = vmatpush1.msra.mxu0 0.0
    %280 = vmatprep.subr.mxu0 0.0
    %281 = vmatpush1.msra.mxu0 0.0
    %282 = vmatprep.subr.mxu0 0.0
    %283 = vmatpush1.msra.mxu0 0.0
    %284 = vmatprep.subr.mxu0 0.0
    %285 = vmatpush1.msra.mxu0 0.0
    %286 = vmatprep.subr.mxu0 0.0
    %287 = vmatpush1.msra.mxu0 0.0
    %288 = vmatprep.subr.mxu0 0.0
    %289 = vmatpush1.msra.mxu0 0.0
    %290 = vmatprep.subr.mxu0 0.0
    %291 = vmatpush1.msra.mxu0 0.0
    %292 = vmatprep.subr.mxu0 0.0
    %293 = vmatpush1.msra.mxu0 0.0
    %294 = vmatprep.subr.mxu0 0.0
    %295 = vmatpush1.msra.mxu0 0.0
    %296 = vmatprep.subr.mxu0 0.0
    %297 = vmatpush1.msra.mxu0 0.0
    %298 = vmatprep.subr.mxu0 0.0
    %299 = vmatpush1.msra.mxu0 0.0
    %300 = vmatprep.mubr.f32.mxu0 0.0
    %301 = vmatmul.mubr.f32.gmra.mrb[0].mxu0 %v234
    %v302 = vpop.f32.mrb[0].mxu0
    %v303 = vadd.f32 %v228, %v302
    %v304 = vpop.f32.mrb[0].mxu0
    %305 = vdwg.mxu0
    %307 = vrot.lane.b32.xlu0 %v303, 104
    %v308 = vpop.permute.xlu0 %307
    %309 = vrot.lane.b32.xlu0 %v303, 80
    %v310 = vpop.permute.xlu0 %309
    %311 = vrot.lane.b32.xlu0 %v303, 56
    %v312 = vpop.permute.xlu0 %311
    %313 = vrot.lane.b32.xlu0 %v303, 120
    %v314 = vpop.permute.xlu0 %313
    %315 = vrot.lane.b32.xlu0 %v308, 120
    %v316 = vpop.permute.xlu0 %315
    %317 = vrot.lane.b32.xlu0 %v310, 120
    %v318 = vpop.permute.xlu0 %317
    %319 = vrot.lane.b32.xlu0 %v312, 120
    %v320 = vpop.permute.xlu0 %319
    %vm321 = vcmask 64512
    %v322 = vsel %vm321, %v303, 0
    %v324 = vsel %vm321, %v308, 0
    %v326 = vsel %vm321, %v310, 0
    %v328 = vsel %vm321, %v312, 0
    %v330 = vsel %vm321, %v314, 0
    %v332 = vsel %vm321, %v316, 0
    %v334 = vsel %vm321, %v318, 0
    %v336 = vsel %vm321, %v320, 0
    %338 = vmatprep.subr.mxu0 0.0
    %339 = vmatpush1.xpose.msra.mxu0 %v330
    %340 = vmatprep.subr.mxu0 0.0
    %341 = vmatpush1.xpose.msra.mxu0 %v332
    %342 = vmatprep.subr.mxu0 0.0
    %343 = vmatpush1.xpose.msra.mxu0 %v334
    %344 = vmatprep.subr.mxu0 0.0
    %345 = vmatpush1.xpose.msra.mxu0 %v336
    %346 = vmatprep.subr.mxu0 0.0
    %347 = vmatpush1.xpose.msra.mxu0 0.0
    %348 = vmatprep.subr.mxu0 0.0
    %349 = vmatpush1.xpose.msra.mxu0 0.0
    %350 = vmatprep.subr.mxu0 0.0
    %351 = vmatpush1.xpose.msra.mxu0 0.0
    %352 = vmatprep.subr.mxu0 0.0
    %353 = vmatpush1.xpose.msra.mxu0 0.0
    %354 = vmatprep.subr.mxu0 0.0
    %355 = vmatpush1.xpose.msra.mxu0 0.0
    %356 = vmatprep.subr.mxu0 0.0
    %357 = vmatpush1.xpose.msra.mxu0 0.0
    %358 = vmatprep.subr.mxu0 0.0
    %359 = vmatpush1.xpose.msra.mxu0 0.0
    %360 = vmatprep.subr.mxu0 0.0
    %361 = vmatpush1.xpose.msra.mxu0 0.0
    %362 = vmatprep.subr.mxu0 0.0
    %363 = vmatpush1.xpose.msra.mxu0 0.0
    %364 = vmatprep.subr.mxu0 0.0
    %365 = vmatpush1.xpose.msra.mxu0 0.0
    %366 = vmatprep.subr.mxu0 0.0
    %367 = vmatpush1.xpose.msra.mxu0 0.0
    %368 = vmatprep.subr.mxu0 0.0
    %369 = vmatpush1.xpose.msra.mxu0 0.0
    %370 = vmatprep.subr.mxu0 0.0
    %371 = vmatpush1.xpose.msra.mxu0 0.0
    %372 = vmatprep.subr.mxu0 0.0
    %373 = vmatpush1.xpose.msra.mxu0 0.0
    %374 = vmatprep.subr.mxu0 0.0
    %375 = vmatpush1.xpose.msra.mxu0 0.0
    %376 = vmatprep.subr.mxu0 0.0
    %377 = vmatpush1.xpose.msra.mxu0 0.0
    %378 = vmatprep.subr.mxu0 0.0
    %379 = vmatpush1.xpose.msra.mxu0 0.0
    %380 = vmatprep.subr.mxu0 0.0
    %381 = vmatpush1.xpose.msra.mxu0 0.0
    %382 = vmatprep.subr.mxu0 0.0
    %383 = vmatpush1.xpose.msra.mxu0 0.0
    %384 = vmatprep.subr.mxu0 0.0
    %385 = vmatpush1.xpose.msra.mxu0 0.0
    %386 = vmatprep.subr.mxu0 0.0
    %387 = vmatpush1.xpose.msra.mxu0 0.0
    %388 = vmatprep.subr.mxu0 0.0
    %389 = vmatpush1.xpose.msra.mxu0 0.0
    %390 = vmatprep.subr.mxu0 0.0
    %391 = vmatpush1.xpose.msra.mxu0 0.0
    %392 = vmatprep.subr.mxu0 0.0
    %393 = vmatpush1.xpose.msra.mxu0 0.0
    %394 = vmatprep.subr.mxu0 0.0
    %395 = vmatpush1.xpose.msra.mxu0 0.0
    %396 = vmatprep.subr.mxu0 0.0
    %397 = vmatpush1.xpose.msra.mxu0 0.0
    %398 = vmatprep.subr.mxu0 0.0
    %399 = vmatpush1.xpose.msra.mxu0 0.0
    %400 = vmatprep.subr.mxu0 0.0
    %401 = vmatpush1.xpose.msra.mxu0 0.0
    %402 = vmatprep.mubr.f32.mxu0 0.0
    %403 = vmatmul.mubr.f32.gmra.mrb[0].mxu0 %v322
    %v404 = vpop.f32.mrb[0].mxu0
    %v405 = vadd.f32 %v204, %v404
    %v406 = vpop.f32.mrb[0].mxu0
    %407 = vmatprep.mubr.f32.mxu0 0.0
    %408 = vmatmul.mubr.f32.gmra.mrb[0].mxu0 %v324
    %v409 = vpop.f32.mrb[0].mxu0
    %v410 = vadd.f32 %v205, %v409
    %v411 = vpop.f32.mrb[0].mxu0
    %412 = vmatprep.mubr.f32.mxu0 0.0
    %413 = vmatmul.mubr.f32.gmra.mrb[0].mxu0 %v326
    %v414 = vpop.f32.mrb[0].mxu0
    %v415 = vadd.f32 %v206, %v414
    %v416 = vpop.f32.mrb[0].mxu0
    %417 = vmatprep.mubr.f32.mxu0 0.0
    %418 = vmatmul.mubr.f32.gmra.mrb[0].mxu0 %v328
    %v419 = vpop.f32.mrb[0].mxu0
    %v420 = vadd.f32 %v207, %v419
    %v421 = vpop.f32.mrb[0].mxu0
    %422 = vdwg.mxu0
    %v423 = vsel %vm232, %v405, -inf
    %424 = vmax.xlane.f32.xlu0 %v423
    %v425 = vpop.xlane.xlu0 %424
    %v426 = vsel %vm232, %v410, -inf
    %427 = vmax.xlane.f32.xlu0 %v426
    %v428 = vpop.xlane.xlu0 %427
    %v429 = vsel %vm232, %v415, -inf
    %430 = vmax.xlane.f32.xlu0 %v429
    %v431 = vpop.xlane.xlu0 %430
    %v432 = vsel %vm232, %v420, -inf
    %433 = vmax.xlane.f32.xlu0 %v432
    %v434 = vpop.xlane.xlu0 %433
    %v435 = vsub.f32 %v405, %v425
    %v436 = vsub.f32 %v410, %v428
    %v437 = vsub.f32 %v415, %v431
    %v438 = vsub.f32 %v420, %v434
    %v439 = vmul.f32 %v435, 1.442695
    %v440 = vpow.pop %v439
    %v441 = vmul.f32 %v436, 1.442695
    %v442 = vpow.pop %v441
    %v443 = vmul.f32 %v437, 1.442695
    %v444 = vpow.pop %v443
    %v445 = vmul.f32 %v438, 1.442695
    %v446 = vpow.pop %v445
    %v447 = vsel %vm232, %v440, 0.0
    %448 = vadd.xlane.f32.xlu0 %v447
    %v449 = vpop.xlane.xlu0 %448
    %v450 = vsel %vm232, %v442, 0.0
    %451 = vadd.xlane.f32.xlu0 %v450
    %v452 = vpop.xlane.xlu0 %451
    %v453 = vsel %vm232, %v444, 0.0
    %454 = vadd.xlane.f32.xlu0 %v453
    %v455 = vpop.xlane.xlu0 %454
    %v456 = vsel %vm232, %v446, 0.0
    %457 = vadd.xlane.f32.xlu0 %v456
    %v458 = vpop.xlane.xlu0 %457
    %v459 = vrcp.pop %v449
    %v460 = vrcp.pop %v452
    %v461 = vrcp.pop %v455
    %v462 = vrcp.pop %v458
    %v463 = vmul.f32 %v440, %v459
    %v464 = vmul.f32 %v442, %v460
    %v465 = vmul.f32 %v444, %v461
    %v466 = vmul.f32 %v446, %v462
    %467 = vrot.lane.b32.xlu0 %v303, 112
    %v468 = vpop.permute.xlu0 %467
    %469 = vrot.lane.b32.xlu0 %v308, 112
    %v470 = vpop.permute.xlu0 %469
    %471 = vrot.lane.b32.xlu0 %v310, 112
    %v472 = vpop.permute.xlu0 %471
    %473 = vrot.lane.b32.xlu0 %v312, 112
    %v474 = vpop.permute.xlu0 %473
    %v480 = vsel %vm232, %v463, 0
    %v483 = vsel %vm232, %v464, 0
    %v486 = vsel %vm232, %v465, 0
    %v489 = vsel %vm232, %v466, 0
    %491 = vmatprep.subr.mxu0 0.0
    %492 = vmatpush1.msra.mxu0 %v468
    %493 = vmatprep.subr.mxu0 0.0
    %494 = vmatpush1.msra.mxu0 %v470
    %495 = vmatprep.subr.mxu0 0.0
    %496 = vmatpush1.msra.mxu0 %v472
    %497 = vmatprep.subr.mxu0 0.0
    %498 = vmatpush1.msra.mxu0 %v474
    %499 = vmatprep.subr.mxu0 0.0
    %500 = vmatpush1.msra.mxu0 0.0
    %501 = vmatprep.subr.mxu0 0.0
    %502 = vmatpush1.msra.mxu0 0.0
    %503 = vmatprep.subr.mxu0 0.0
    %504 = vmatpush1.msra.mxu0 0.0
    %505 = vmatprep.subr.mxu0 0.0
    %506 = vmatpush1.msra.mxu0 0.0
    %507 = vmatprep.subr.mxu0 0.0
    %508 = vmatpush1.msra.mxu0 0.0
    %509 = vmatprep.subr.mxu0 0.0
    %510 = vmatpush1.msra.mxu0 0.0
    %511 = vmatprep.subr.mxu0 0.0
    %512 = vmatpush1.msra.mxu0 0.0
    %513 = vmatprep.subr.mxu0 0.0
    %514 = vmatpush1.msra.mxu0 0.0
    %515 = vmatprep.subr.mxu0 0.0
    %516 = vmatpush1.msra.mxu0 0.0
    %517 = vmatprep.subr.mxu0 0.0
    %518 = vmatpush1.msra.mxu0 0.0
    %519 = vmatprep.subr.mxu0 0.0
    %520 = vmatpush1.msra.mxu0 0.0
    %521 = vmatprep.subr.mxu0 0.0
    %522 = vmatpush1.msra.mxu0 0.0
    %523 = vmatprep.subr.mxu0 0.0
    %524 = vmatpush1.msra.mxu0 0.0
    %525 = vmatprep.subr.mxu0 0.0
    %526 = vmatpush1.msra.mxu0 0.0
    %527 = vmatprep.subr.mxu0 0.0
    %528 = vmatpush1.msra.mxu0 0.0
    %529 = vmatprep.subr.mxu0 0.0
    %530 = vmatpush1.msra.mxu0 0.0
    %531 = vmatprep.subr.mxu0 0.0
    %532 = vmatpush1.msra.mxu0 0.0
    %533 = vmatprep.subr.mxu0 0.0
    %534 = vmatpush1.msra.mxu0 0.0
    %535 = vmatprep.subr.mxu0 0.0
    %536 = vmatpush1.msra.mxu0 0.0
    %537 = vmatprep.subr.mxu0 0.0
    %538 = vmatpush1.msra.mxu0 0.0
    %539 = vmatprep.subr.mxu0 0.0
    %540 = vmatpush1.msra.mxu0 0.0
    %541 = vmatprep.subr.mxu0 0.0
    %542 = vmatpush1.msra.mxu0 0.0
    %543 = vmatprep.subr.mxu0 0.0
    %544 = vmatpush1.msra.mxu0 0.0
    %545 = vmatprep.subr.mxu0 0.0
    %546 = vmatpush1.msra.mxu0 0.0
    %547 = vmatprep.subr.mxu0 0.0
    %548 = vmatpush1.msra.mxu0 0.0
    %549 = vmatprep.subr.mxu0 0.0
    %550 = vmatpush1.msra.mxu0 0.0
    %551 = vmatprep.subr.mxu0 0.0
    %552 = vmatpush1.msra.mxu0 0.0
    %553 = vmatprep.subr.mxu0 0.0
    %554 = vmatpush1.msra.mxu0 0.0
    %555 = vmatprep.mubr.f32.mxu0 0.0
    %556 = vmatmul.mubr.f32.gmra.mrb[0].mxu0 %v480
    %v557 = vpop.f32.mrb[0].mxu0
    %v558 = vadd.f32 0.0, %v557
    %v559 = vpop.f32.mrb[0].mxu0
    %560 = vmatprep.mubr.f32.mxu0 0.0
    %561 = vmatmul.mubr.f32.gmra.mrb[0].mxu0 %v483
    %v562 = vpop.f32.mrb[0].mxu0
    %v563 = vadd.f32 0.0, %v562
    %v564 = vpop.f32.mrb[0].mxu0
    %565 = vmatprep.mubr.f32.mxu0 0.0
    %566 = vmatmul.mubr.f32.gmra.mrb[0].mxu0 %v486
    %v567 = vpop.f32.mrb[0].mxu0
    %v568 = vadd.f32 0.0, %v567
    %v569 = vpop.f32.mrb[0].mxu0
    %570 = vmatprep.mubr.f32.mxu0 0.0
    %571 = vmatmul.mubr.f32.gmra.mrb[0].mxu0 %v489
    %v572 = vpop.f32.mrb[0].mxu0
    %v573 = vadd.f32 0.0, %v572
    %v574 = vpop.f32.mrb[0].mxu0
    %575 = vdwg.mxu0
    %577 = vrot.lane.b32.xlu0 %v563, 8
    %v578 = vpop.permute.xlu0 %577
    %581 = vrot.lane.b32.xlu0 %v568, 16
    %v582 = vpop.permute.xlu0 %581
    %585 = vrot.lane.b32.xlu0 %v573, 24
    %v586 = vpop.permute.xlu0 %585
    %v588 = vsel %vm321, %v558, %v578
    %vm589 = vcmask 130048
    %v590 = vsel %vm589, %v588, %v582
    %vm591 = vcmask 195584
    %v592 = vsel %vm591, %v590, %v586
    %v594 = vsel %vm232, %v592, 0
    %596 = vmatprep.subr.mxu0 0.0
    %597 = vmatpush1.msra.mxu0 %v212
    %598 = vmatprep.subr.mxu0 0.0
    %599 = vmatpush1.msra.mxu0 %v213
    %600 = vmatprep.subr.mxu0 0.0
    %601 = vmatpush1.msra.mxu0 %v214
    %602 = vmatprep.subr.mxu0 0.0
    %603 = vmatpush1.msra.mxu0 %v215
    %604 = vmatprep.subr.mxu0 0.0
    %605 = vmatpush1.msra.mxu0 0.0
    %606 = vmatprep.subr.mxu0 0.0
    %607 = vmatpush1.msra.mxu0 0.0
    %608 = vmatprep.subr.mxu0 0.0
    %609 = vmatpush1.msra.mxu0 0.0
    %610 = vmatprep.subr.mxu0 0.0
    %611 = vmatpush1.msra.mxu0 0.0
    %612 = vmatprep.subr.mxu0 0.0
    %613 = vmatpush1.msra.mxu0 0.0
    %614 = vmatprep.subr.mxu0 0.0
    %615 = vmatpush1.msra.mxu0 0.0
    %616 = vmatprep.subr.mxu0 0.0
    %617 = vmatpush1.msra.mxu0 0.0
    %618 = vmatprep.subr.mxu0 0.0
    %619 = vmatpush1.msra.mxu0 0.0
    %620 = vmatprep.subr.mxu0 0.0
    %621 = vmatpush1.msra.mxu0 0.0
    %622 = vmatprep.subr.mxu0 0.0
    %623 = vmatpush1.msra.mxu0 0.0
    %624 = vmatprep.subr.mxu0 0.0
    %625 = vmatpush1.msra.mxu0 0.0
    %626 = vmatprep.subr.mxu0 0.0
    %627 = vmatpush1.msra.mxu0 0.0
    %628 = vmatprep.subr.mxu0 0.0
    %629 = vmatpush1.msra.mxu0 0.0
    %630 = vmatprep.subr.mxu0 0.0
    %631 = vmatpush1.msra.mxu0 0.0
    %632 = vmatprep.subr.mxu0 0.0
    %633 = vmatpush1.msra.mxu0 0.0
    %634 = vmatprep.subr.mxu0 0.0
    %635 = vmatpush1.msra.mxu0 0.0
    %636 = vmatprep.subr.mxu0 0.0
    %637 = vmatpush1.msra.mxu0 0.0
    %638 = vmatprep.subr.mxu0 0.0
    %639 = vmatpush1.msra.mxu0 0.0
    %640 = vmatprep.subr.mxu0 0.0
    %641 = vmatpush1.msra.mxu0 0.0
    %642 = vmatprep.subr.mxu0 0.0
    %643 = vmatpush1.msra.mxu0 0.0
    %644 = vmatprep.subr.mxu0 0.0
    %645 = vmatpush1.msra.mxu0 0.0
    %646 = vmatprep.subr.mxu0 0.0
    %647 = vmatpush1.msra.mxu0 0.0
    %648 = vmatprep.subr.mxu0 0.0
    %649 = vmatpush1.msra.mxu0 0.0
    %650 = vmatprep.subr.mxu0 0.0
    %651 = vmatpush1.msra.mxu0 0.0
    %652 = vmatprep.subr.mxu0 0.0
    %653 = vmatpush1.msra.mxu0 0.0
    %654 = vmatprep.subr.mxu0 0.0
    %655 = vmatpush1.msra.mxu0 0.0
    %656 = vmatprep.subr.mxu0 0.0
    %657 = vmatpush1.msra.mxu0 0.0
    %658 = vmatprep.subr.mxu0 0.0
    %659 = vmatpush1.msra.mxu0 0.0
    %660 = vmatprep.mubr.f32.mxu0 0.0
    %661 = vmatmul.mubr.f32.gmra.mrb[0].mxu0 %v594
    %v662 = vpop.f32.mrb[0].mxu0
    %v663 = vadd.f32 %v229, %v662
    %v664 = vpop.f32.mrb[0].mxu0
    %665 = vdwg.mxu0
    %v666 = vadd.f32 %v663, %v118
    %v667 = vsel %vm232, %v666, 0.0
    %668 = vadd.xlane.f32.xlu0 %v667
    %v669 = vpop.xlane.xlu0 %668
    %v670 = vrcp.pop 32.0
    %v671 = vmul.f32 %v669, %v670
    %v672 = vsub.f32 %v666, %v671
    %v673 = vmul.f32 %v672, %v672
    %v674 = vsel %vm232, %v673, 0.0
    %675 = vadd.xlane.f32.xlu0 %v674
    %v676 = vpop.xlane.xlu0 %675
    %v677 = vmul.f32 %v676, %v670
    %v678 = vadd.f32 %v677, 1e-05
    %v679 = vrsqrt.pop %v678
    %v680 = vmul.f32 %v672, %v679
    %v682 = vsel %vm232, %v680, 0
    %684 = vmatprep.subr.mxu0 0.0
    %685 = vmatpush1.msra.mxu0 %v216
    %686 = vmatprep.subr.mxu0 0.0
    %687 = vmatpush1.msra.mxu0 %v217
    %688 = vmatprep.subr.mxu0 0.0
    %689 = vmatpush1.msra.mxu0 %v218
    %690 = vmatprep.subr.mxu0 0.0
    %691 = vmatpush1.msra.mxu0 %v219
    %692 = vmatprep.subr.mxu0 0.0
    %693 = vmatpush1.msra.mxu0 0.0
    %694 = vmatprep.subr.mxu0 0.0
    %695 = vmatpush1.msra.mxu0 0.0
    %696 = vmatprep.subr.mxu0 0.0
    %697 = vmatpush1.msra.mxu0 0.0
    %698 = vmatprep.subr.mxu0 0.0
    %699 = vmatpush1.msra.mxu0 0.0
    %700 = vmatprep.subr.mxu0 0.0
    %701 = vmatpush1.msra.mxu0 0.0
    %702 = vmatprep.subr.mxu0 0.0
    %703 = vmatpush1.msra.mxu0 0.0
    %704 = vmatprep.subr.mxu0 0.0
    %705 = vmatpush1.msra.mxu0 0.0
    %706 = vmatprep.subr.mxu0 0.0
    %707 = vmatpush1.msra.mxu0 0.0
    %708 = vmatprep.subr.mxu0 0.0
    %709 = vmatpush1.msra.mxu0 0.0
    %710 = vmatprep.subr.mxu0 0.0
    %711 = vmatpush1.msra.mxu0 0.0
    %712 = vmatprep.subr.mxu0 0.0
    %713 = vmatpush1.msra.mxu0 0.0
    %714 = vmatprep.subr.mxu0 0.0
    %715 = vmatpush1.msra.mxu0 0.0
    %716 = vmatprep.subr.mxu0 0.0
    %717 = vmatpush1.msra.mxu0 0.0
    %718 = vmatprep.subr.mxu0 0.0
    %719 = vmatpush1.msra.mxu0 0.0
    %720 = vmatprep.subr.mxu0 0.0
    %721 = vmatpush1.msra.mxu0 0.0
    %722 = vmatprep.subr.mxu0 0.0
    %723 = vmatpush1.msra.mxu0 0.0
    %724 = vmatprep.subr.mxu0 0.0
    %725 = vmatpush1.msra.mxu0 0.0
    %726 = vmatprep.subr.mxu0 0.0
    %727 = vmatpush1.msra.mxu0 0.0
    %728 = vmatprep.subr.mxu0 0.0
    %729 = vmatpush1.msra.mxu0 0.0
    %730 = vmatprep.subr.mxu0 0.0
    %731 = vmatpush1.msra.mxu0 0.0
    %732 = vmatprep.subr.mxu0 0.0
    %733 = vmatpush1.msra.mxu0 0.0
    %734 = vmatprep.subr.mxu0 0.0
    %735 = vmatpush1.msra.mxu0 0.0
    %736 = vmatprep.subr.mxu0 0.0
    %737 = vmatpush1.msra.mxu0 0.0
    %738 = vmatprep.subr.mxu0 0.0
    %739 = vmatpush1.msra.mxu0 0.0
    %740 = vmatprep.subr.mxu0 0.0
    %741 = vmatpush1.msra.mxu0 0.0
    %742 = vmatprep.subr.mxu0 0.0
    %743 = vmatpush1.msra.mxu0 0.0
    %744 = vmatprep.subr.mxu0 0.0
    %745 = vmatpush1.msra.mxu0 0.0
    %746 = vmatprep.subr.mxu0 0.0
    %747 = vmatpush1.msra.mxu0 0.0
    %748 = vmatprep.mubr.f32.mxu0 0.0
    %749 = vmatmul.mubr.f32.gmra.mrb[0].mxu0 %v682
    %v750 = vpop.f32.mrb[0].mxu0
    %v751 = vadd.f32 %v230, %v750
    %v752 = vpop.f32.mrb[0].mxu0
    %753 = vdwg.mxu0
    %v754 = vmul.f32 %v751, 0.5
    %v755 = vmul.f32 %v751, 0.70710677
    %v756 = verf.f32.pop %v755
    %v757 = vadd.f32 %v756, 1.0
    %v758 = vmul.f32 %v754, %v757
    %vm759 = vcmask 523264
    %v761 = vsel %vm759, %v758, 0
    %763 = vmatprep.subr.mxu0 0.0
    %764 = vmatpush1.msra.mxu0 %v220
    %765 = vmatprep.subr.mxu0 0.0
    %766 = vmatpush1.msra.mxu0 %v221
    %767 = vmatprep.subr.mxu0 0.0
    %768 = vmatpush1.msra.mxu0 %v222
    %769 = vmatprep.subr.mxu0 0.0
    %770 = vmatpush1.msra.mxu0 %v223
    %771 = vmatprep.subr.mxu0 0.0
    %772 = vmatpush1.msra.mxu0 %v224
    %773 = vmatprep.subr.mxu0 0.0
    %774 = vmatpush1.msra.mxu0 %v225
    %775 = vmatprep.subr.mxu0 0.0
    %776 = vmatpush1.msra.mxu0 %v226
    %777 = vmatprep.subr.mxu0 0.0
    %778 = vmatpush1.msra.mxu0 %v227
    %779 = vmatprep.subr.mxu0 0.0
    %780 = vmatpush1.msra.mxu0 0.0
    %781 = vmatprep.subr.mxu0 0.0
    %782 = vmatpush1.msra.mxu0 0.0
    %783 = vmatprep.subr.mxu0 0.0
    %784 = vmatpush1.msra.mxu0 0.0
    %785 = vmatprep.subr.mxu0 0.0
    %786 = vmatpush1.msra.mxu0 0.0
    %787 = vmatprep.subr.mxu0 0.0
    %788 = vmatpush1.msra.mxu0 0.0
    %789 = vmatprep.subr.mxu0 0.0
    %790 = vmatpush1.msra.mxu0 0.0
    %791 = vmatprep.subr.mxu0 0.0
    %792 = vmatpush1.msra.mxu0 0.0
    %793 = vmatprep.subr.mxu0 0.0
    %794 = vmatpush1.msra.mxu0 0.0
    %795 = vmatprep.subr.mxu0 0.0
    %796 = vmatpush1.msra.mxu0 0.0
    %797 = vmatprep.subr.mxu0 0.0
    %798 = vmatpush1.msra.mxu0 0.0
    %799 = vmatprep.subr.mxu0 0.0
    %800 = vmatpush1.msra.mxu0 0.0
    %801 = vmatprep.subr.mxu0 0.0
    %802 = vmatpush1.msra.mxu0 0.0
    %803 = vmatprep.subr.mxu0 0.0
    %804 = vmatpush1.msra.mxu0 0.0
    %805 = vmatprep.subr.mxu0 0.0
    %806 = vmatpush1.msra.mxu0 0.0
    %807 = vmatprep.subr.mxu0 0.0
    %808 = vmatpush1.msra.mxu0 0.0
    %809 = vmatprep.subr.mxu0 0.0
    %810 = vmatpush1.msra.mxu0 0.0
    %811 = vmatprep.subr.mxu0 0.0
    %812 = vmatpush1.msra.mxu0 0.0
    %813 = vmatprep.subr.mxu0 0.0
    %814 = vmatpush1.msra.mxu0 0.0
    %815 = vmatprep.subr.mxu0 0.0
    %816 = vmatpush1.msra.mxu0 0.0
    %817 = vmatprep.subr.mxu0 0.0
    %818 = vmatpush1.msra.mxu0 0.0
    %819 = vmatprep.subr.mxu0 0.0
    %820 = vmatpush1.msra.mxu0 0.0
    %821 = vmatprep.subr.mxu0 0.0
    %822 = vmatpush1.msra.mxu0 0.0
    %823 = vmatprep.subr.mxu0 0.0
    %824 = vmatpush1.msra.mxu0 0.0
    %825 = vmatprep.subr.mxu0 0.0
    %826 = vmatpush1.msra.mxu0 0.0
    %827 = vmatprep.mubr.f32.mxu0 0.0
    %828 = vmatmul.mubr.f32.gmra.mrb[0].mxu0 %v761
    %v829 = vpop.f32.mrb[0].mxu0
    %v830 = vadd.f32 %v231, %v829
    %v831 = vpop.f32.mrb[0].mxu0
    %832 = vdwg.mxu0
    %v833 = vadd.f32 %v680, %v830
    %v834 = vsel %vm232, %v833, 0.0
    %835 = vadd.xlane.f32.xlu0 %v834
    %v836 = vpop.xlane.xlu0 %835
    %v837 = vmul.f32 %v836, %v670
    %v838 = vsub.f32 %v833, %v837
    %v839 = vmul.f32 %v838, %v838
    %v840 = vsel %vm232, %v839, 0.0
    %841 = vadd.xlane.f32.xlu0 %v840
    %v842 = vpop.xlane.xlu0 %841
    %v843 = vmul.f32 %v842, %v670
    %v844 = vadd.f32 %v843, 1e-05
    %v845 = vrsqrt.pop %v844
    %v846 = vmul.f32 %v838, %v845
    %s847 = scalar_lea.vmem %s4, 32
    %v848 = vld [vmem:[%s847] sm:$0xff]
    %v849 = vld [vmem:[%s847 + $0x8] sm:$0xff]
    %v850 = vld [vmem:[%s847 + $0x10] sm:$0xff]
    %v851 = vld [vmem:[%s847 + $0x18] sm:$0xff]
    %s852 = scalar_lea.vmem %s5, 32
    %v853 = vld [vmem:[%s852] sm:$0xff]
    %v854 = vld [vmem:[%s852 + $0x8] sm:$0xff]
    %v855 = vld [vmem:[%s852 + $0x10] sm:$0xff]
    %v856 = vld [vmem:[%s852 + $0x18] sm:$0xff]
    %s857 = scalar_lea.vmem %s6, 32
    %v858 = vld [vmem:[%s857] sm:$0xff]
    %v859 = vld [vmem:[%s857 + $0x8] sm:$0xff]
    %v860 = vld [vmem:[%s857 + $0x10] sm:$0xff]
    %v861 = vld [vmem:[%s857 + $0x18] sm:$0xff]
    %s862 = scalar_lea.vmem %s7, 64
    %v863 = vld [vmem:[%s862] sm:$0xff]
    %v864 = vld [vmem:[%s862 + $0x8] sm:$0xff]
    %v865 = vld [vmem:[%s862 + $0x10] sm:$0xff]
    %v866 = vld [vmem:[%s862 + $0x18] sm:$0xff]
    %v867 = vld [vmem:[%s862 + $0x20] sm:$0xff]
    %v868 = vld [vmem:[%s862 + $0x28] sm:$0xff]
    %v869 = vld [vmem:[%s862 + $0x30] sm:$0xff]
    %v870 = vld [vmem:[%s862 + $0x38] sm:$0xff]
    %s871 = scalar_lea.vmem [#allocation6], 32
    %v872 = vld [vmem:[%s871] sm:$0xff]
    %v873 = vld [vmem:[%s871 + $0x8] sm:$0xff]
    %v874 = vld [vmem:[%s871 + $0x10] sm:$0xff]
    %v875 = vld [vmem:[%s871 + $0x18] sm:$0xff]
    %v877 = vsel %vm232, %v846, 0
    %879 = vmatprep.subr.mxu0 0.0
    %880 = vmatpush1.msra.mxu0 %v848
    %881 = vmatprep.subr.mxu0 0.0
    %882 = vmatpush1.msra.mxu0 %v849
    %883 = vmatprep.subr.mxu0 0.0
    %884 = vmatpush1.msra.mxu0 %v850
    %885 = vmatprep.subr.mxu0 0.0
    %886 = vmatpush1.msra.mxu0 %v851
    %887 = vmatprep.subr.mxu0 0.0
    %888 = vmatpush1.msra.mxu0 0.0
    %889 = vmatprep.subr.mxu0 0.0
    %890 = vmatpush1.msra.mxu0 0.0
    %891 = vmatprep.subr.mxu0 0.0
    %892 = vmatpush1.msra.mxu0 0.0
    %893 = vmatprep.subr.mxu0 0.0
    %894 = vmatpush1.msra.mxu0 0.0
    %895 = vmatprep.subr.mxu0 0.0
    %896 = vmatpush1.msra.mxu0 0.0
    %897 = vmatprep.subr.mxu0 0.0
    %898 = vmatpush1.msra.mxu0 0.0
    %899 = vmatprep.subr.mxu0 0.0
    %900 = vmatpush1.msra.mxu0 0.0
    %901 = vmatprep.subr.mxu0 0.0
    %902 = vmatpush1.msra.mxu0 0.0
    %903 = vmatprep.subr.mxu0 0.0
    %904 = vmatpush1.msra.mxu0 0.0
    %905 = vmatprep.subr.mxu0 0.0
    %906 = vmatpush1.msra.mxu0 0.0
    %907 = vmatprep.subr.mxu0 0.0
    %908 = vmatpush1.msra.mxu0 0.0
    %909 = vmatprep.subr.mxu0 0.0
    %910 = vmatpush1.msra.mxu0 0.0
    %911 = vmatprep.subr.mxu0 0.0
    %912 = vmatpush1.msra.mxu0 0.0
    %913 = vmatprep.subr.mxu0 0.0
    %914 = vmatpush1.msra.mxu0 0.0
    %915 = vmatprep.subr.mxu0 0.0
    %916 = vmatpush1.msra.mxu0 0.0
    %917 = vmatprep.subr.mxu0 0.0
    %918 = vmatpush1.msra.mxu0 0.0
    %919 = vmatprep.subr.mxu0 0.0
    %920 = vmatpush1.msra.mxu0 0.0
    %921 = vmatprep.subr.mxu0 0.0
    %922 = vmatpush1.msra.mxu0 0.0
    %923 = vmatprep.subr.mxu0 0.0
    %924 = vmatpush1.msra.mxu0 0.0
    %925 = vmatprep.subr.mxu0 0.0
    %926 = vmatpush1.msra.mxu0 0.0
    %927 = vmatprep.subr.mxu0 0.0
    %928 = vmatpush1.msra.mxu0 0.0
    %929 = vmatprep.subr.mxu0 0.0
    %930 = vmatpush1.msra.mxu0 0.0
    %931 = vmatprep.subr.mxu0 0.0
    %932 = vmatpush1.msra.mxu0 0.0
    %933 = vmatprep.subr.mxu0 0.0
    %934 = vmatpush1.msra.mxu0 0.0
    %935 = vmatprep.subr.mxu0 0.0
    %936 = vmatpush1.msra.mxu0 0.0
    %937 = vmatprep.subr.mxu0 0.0
    %938 = vmatpush1.msra.mxu0 0.0
    %939 = vmatprep.subr.mxu0 0.0
    %940 = vmatpush1.msra.mxu0 0.0
    %941 = vmatprep.subr.mxu0 0.0
    %942 = vmatpush1.msra.mxu0 0.0
    %943 = vmatprep.mubr.f32.mxu0 0.0
    %944 = vmatmul.mubr.f32.gmra.mrb[0].mxu0 %v877
    %v945 = vpop.f32.mrb[0].mxu0
    %v946 = vadd.f32 %v872, %v945
    %v947 = vpop.f32.mrb[0].mxu0
    %948 = vdwg.mxu0
    %950 = vrot.lane.b32.xlu0 %v946, 104
    %v951 = vpop.permute.xlu0 %950
    %952 = vrot.lane.b32.xlu0 %v946, 80
    %v953 = vpop.permute.xlu0 %952
    %954 = vrot.lane.b32.xlu0 %v946, 56
    %v955 = vpop.permute.xlu0 %954
    %956 = vrot.lane.b32.xlu0 %v946, 120
    %v957 = vpop.permute.xlu0 %956
    %958 = vrot.lane.b32.xlu0 %v951, 120
    %v959 = vpop.permute.xlu0 %958
    %960 = vrot.lane.b32.xlu0 %v953, 120
    %v961 = vpop.permute.xlu0 %960
    %962 = vrot.lane.b32.xlu0 %v955, 120
    %v963 = vpop.permute.xlu0 %962
    %v964 = vsel %vm321, %v946, 0
    %v966 = vsel %vm321, %v951, 0
    %v968 = vsel %vm321, %v953, 0
    %v970 = vsel %vm321, %v955, 0
    %v972 = vsel %vm321, %v957, 0
    %v974 = vsel %vm321, %v959, 0
    %v976 = vsel %vm321, %v961, 0
    %v978 = vsel %vm321, %v963, 0
    %980 = vmatprep.subr.mxu0 0.0
    %981 = vmatpush1.xpose.msra.mxu0 %v972
    %982 = vmatprep.subr.mxu0 0.0
    %983 = vmatpush1.xpose.msra.mxu0 %v974
    %984 = vmatprep.subr.mxu0 0.0
    %985 = vmatpush1.xpose.msra.mxu0 %v976
    %986 = vmatprep.subr.mxu0 0.0
    %987 = vmatpush1.xpose.msra.mxu0 %v978
    %988 = vmatprep.subr.mxu0 0.0
    %989 = vmatpush1.xpose.msra.mxu0 0.0
    %990 = vmatprep.subr.mxu0 0.0
    %991 = vmatpush1.xpose.msra.mxu0 0.0
    %992 = vmatprep.subr.mxu0 0.0
    %993 = vmatpush1.xpose.msra.mxu0 0.0
    %994 = vmatprep.subr.mxu0 0.0
    %995 = vmatpush1.xpose.msra.mxu0 0.0
    %996 = vmatprep.subr.mxu0 0.0
    %997 = vmatpush1.xpose.msra.mxu0 0.0
    %998 = vmatprep.subr.mxu0 0.0
    %999 = vmatpush1.xpose.msra.mxu0 0.0
    %1000 = vmatprep.subr.mxu0 0.0
    %1001 = vmatpush1.xpose.msra.mxu0 0.0
    %1002 = vmatprep.subr.mxu0 0.0
    %1003 = vmatpush1.xpose.msra.mxu0 0.0
    %1004 = vmatprep.subr.mxu0 0.0
    %1005 = vmatpush1.xpose.msra.mxu0 0.0
    %1006 = vmatprep.subr.mxu0 0.0
    %1007 = vmatpush1.xpose.msra.mxu0 0.0
    %1008 = vmatprep.subr.mxu0 0.0
    %1009 = vmatpush1.xpose.msra.mxu0 0.0
    %1010 = vmatprep.subr.mxu0 0.0
    %1011 = vmatpush1.xpose.msra.mxu0 0.0
    %1012 = vmatprep.subr.mxu0 0.0
    %1013 = vmatpush1.xpose.msra.mxu0 0.0
    %1014 = vmatprep.subr.mxu0 0.0
    %1015 = vmatpush1.xpose.msra.mxu0 0.0
    %1016 = vmatprep.subr.mxu0 0.0
    %1017 = vmatpush1.xpose.msra.mxu0 0.0
    %1018 = vmatprep.subr.mxu0 0.0
    %1019 = vmatpush1.xpose.msra.mxu0 0.0
    %1020 = vmatprep.subr.mxu0 0.0
    %1021 = vmatpush1.xpose.msra.mxu0 0.0
    %1022 = vmatprep.subr.mxu0 0.0
    %1023 = vmatpush1.xpose.msra.mxu0 0.0
    %1024 = vmatprep.subr.mxu0 0.0
    %1025 = vmatpush1.xpose.msra.mxu0 0.0
    %1026 = vmatprep.subr.mxu0 0.0
    %1027 = vmatpush1.xpose.msra.mxu0 0.0
    %1028 = vmatprep.subr.mxu0 0.0
    %1029 = vmatpush1.xpose.msra.mxu0 0.0
    %1030 = vmatprep.subr.mxu0 0.0
    %1031 = vmatpush1.xpose.msra.mxu0 0.0
    %1032 = vmatprep.subr.mxu0 0.0
    %1033 = vmatpush1.xpose.msra.mxu0 0.0
    %1034 = vmatprep.subr.mxu0 0.0
    %1035 = vmatpush1.xpose.msra.mxu0 0.0
    %1036 = vmatprep.subr.mxu0 0.0
    %1037 = vmatpush1.xpose.msra.mxu0 0.0
    %1038 = vmatprep.subr.mxu0 0.0
    %1039 = vmatpush1.xpose.msra.mxu0 0.0
    %1040 = vmatprep.subr.mxu0 0.0
    %1041 = vmatpush1.xpose.msra.mxu0 0.0
    %1042 = vmatprep.subr.mxu0 0.0
    %1043 = vmatpush1.xpose.msra.mxu0 0.0
    %1044 = vmatprep.mubr.f32.mxu0 0.0
    %1045 = vmatmul.mubr.f32.gmra.mrb[0].mxu0 %v964
    %v1046 = vpop.f32.mrb[0].mxu0
    %v1047 = vadd.f32 %v204, %v1046
    %v1048 = vpop.f32.mrb[0].mxu0
    %1049 = vmatprep.mubr.f32.mxu0 0.0
    %1050 = vmatmul.mubr.f32.gmra.mrb[0].mxu0 %v966
    %v1051 = vpop.f32.mrb[0].mxu0
    %v1052 = vadd.f32 %v205, %v1051
    %v1053 = vpop.f32.mrb[0].mxu0
    %1054 = vmatprep.mubr.f32.mxu0 0.0
    %1055 = vmatmul.mubr.f32.gmra.mrb[0].mxu0 %v968
    %v1056 = vpop.f32.mrb[0].mxu0
    %v1057 = vadd.f32 %v206, %v1056
    %v1058 = vpop.f32.mrb[0].mxu0
    %1059 = vmatprep.mubr.f32.mxu0 0.0
    %1060 = vmatmul.mubr.f32.gmra.mrb[0].mxu0 %v970
    %v1061 = vpop.f32.mrb[0].mxu0
    %v1062 = vadd.f32 %v207, %v1061
    %v1063 = vpop.f32.mrb[0].mxu0
    %1064 = vdwg.mxu0
    %v1065 = vsel %vm232, %v1047, -inf
    %1066 = vmax.xlane.f32.xlu0 %v1065
    %v1067 = vpop.xlane.xlu0 %1066
    %v1068 = vsel %vm232, %v1052, -inf
    %1069 = vmax.xlane.f32.xlu0 %v1068
    %v1070 = vpop.xlane.xlu0 %1069
    %v1071 = vsel %vm232, %v1057, -inf
    %1072 = vmax.xlane.f32.xlu0 %v1071
    %v1073 = vpop.xlane.xlu0 %1072
    %v1074 = vsel %vm232, %v1062, -inf
    %1075 = vmax.xlane.f32.xlu0 %v1074
    %v1076 = vpop.xlane.xlu0 %1075
    %v1077 = vsub.f32 %v1047, %v1067
    %v1078 = vsub.f32 %v1052, %v1070
    %v1079 = vsub.f32 %v1057, %v1073
    %v1080 = vsub.f32 %v1062, %v1076
    %v1081 = vmul.f32 %v1077, 1.442695
    %v1082 = vpow.pop %v1081
    %v1083 = vmul.f32 %v1078, 1.442695
    %v1084 = vpow.pop %v1083
    %v1085 = vmul.f32 %v1079, 1.442695
    %v1086 = vpow.pop %v1085
    %v1087 = vmul.f32 %v1080, 1.442695
    %v1088 = vpow.pop %v1087
    %v1089 = vsel %vm232, %v1082, 0.0
    %1090 = vadd.xlane.f32.xlu0 %v1089
    %v1091 = vpop.xlane.xlu0 %1090
    %v1092 = vsel %vm232, %v1084, 0.0
    %1093 = vadd.xlane.f32.xlu0 %v1092
    %v1094 = vpop.xlane.xlu0 %1093
    %v1095 = vsel %vm232, %v1086, 0.0
    %1096 = vadd.xlane.f32.xlu0 %v1095
    %v1097 = vpop.xlane.xlu0 %1096
    %v1098 = vsel %vm232, %v1088, 0.0
    %1099 = vadd.xlane.f32.xlu0 %v1098
    %v1100 = vpop.xlane.xlu0 %1099
    %v1101 = vrcp.pop %v1091
    %v1102 = vrcp.pop %v1094
    %v1103 = vrcp.pop %v1097
    %v1104 = vrcp.pop %v1100
    %v1105 = vmul.f32 %v1082, %v1101
    %v1106 = vmul.f32 %v1084, %v1102
    %v1107 = vmul.f32 %v1086, %v1103
    %v1108 = vmul.f32 %v1088, %v1104
    %1109 = vrot.lane.b32.xlu0 %v946, 112
    %v1110 = vpop.permute.xlu0 %1109
    %1111 = vrot.lane.b32.xlu0 %v951, 112
    %v1112 = vpop.permute.xlu0 %1111
    %1113 = vrot.lane.b32.xlu0 %v953, 112
    %v1114 = vpop.permute.xlu0 %1113
    %1115 = vrot.lane.b32.xlu0 %v955, 112
    %v1116 = vpop.permute.xlu0 %1115
    %v1122 = vsel %vm232, %v1105, 0
    %v1125 = vsel %vm232, %v1106, 0
    %v1128 = vsel %vm232, %v1107, 0
    %v1131 = vsel %vm232, %v1108, 0
    %1133 = vmatprep.subr.mxu0 0.0
    %1134 = vmatpush1.msra.mxu0 %v1110
    %1135 = vmatprep.subr.mxu0 0.0
    %1136 = vmatpush1.msra.mxu0 %v1112
    %1137 = vmatprep.subr.mxu0 0.0
    %1138 = vmatpush1.msra.mxu0 %v1114
    %1139 = vmatprep.subr.mxu0 0.0
    %1140 = vmatpush1.msra.mxu0 %v1116
    %1141 = vmatprep.subr.mxu0 0.0
    %1142 = vmatpush1.msra.mxu0 0.0
    %1143 = vmatprep.subr.mxu0 0.0
    %1144 = vmatpush1.msra.mxu0 0.0
    %1145 = vmatprep.subr.mxu0 0.0
    %1146 = vmatpush1.msra.mxu0 0.0
    %1147 = vmatprep.subr.mxu0 0.0
    %1148 = vmatpush1.msra.mxu0 0.0
    %1149 = vmatprep.subr.mxu0 0.0
    %1150 = vmatpush1.msra.mxu0 0.0
    %1151 = vmatprep.subr.mxu0 0.0
    %1152 = vmatpush1.msra.mxu0 0.0
    %1153 = vmatprep.subr.mxu0 0.0
    %1154 = vmatpush1.msra.mxu0 0.0
    %1155 = vmatprep.subr.mxu0 0.0
    %1156 = vmatpush1.msra.mxu0 0.0
    %1157 = vmatprep.subr.mxu0 0.0
    %1158 = vmatpush1.msra.mxu0 0.0
    %1159 = vmatprep.subr.mxu0 0.0
    %1160 = vmatpush1.msra.mxu0 0.0
    %1161 = vmatprep.subr.mxu0 0.0
    %1162 = vmatpush1.msra.mxu0 0.0
    %1163 = vmatprep.subr.mxu0 0.0
    %1164 = vmatpush1.msra.mxu0 0.0
    %1165 = vmatprep.subr.mxu0 0.0
    %1166 = vmatpush1.msra.mxu0 0.0
    %1167 = vmatprep.subr.mxu0 0.0
    %1168 = vmatpush1.msra.mxu0 0.0
    %1169 = vmatprep.subr.mxu0 0.0
    %1170 = vmatpush1.msra.mxu0 0.0
    %1171 = vmatprep.subr.mxu0 0.0
    %1172 = vmatpush1.msra.mxu0 0.0
    %1173 = vmatprep.subr.mxu0 0.0
    %1174 = vmatpush1.msra.mxu0 0.0
    %1175 = vmatprep.subr.mxu0 0.0
    %1176 = vmatpush1.msra.mxu0 0.0
    %1177 = vmatprep.subr.mxu0 0.0
    %1178 = vmatpush1.msra.mxu0 0.0
    %1179 = vmatprep.subr.mxu0 0.0
    %1180 = vmatpush1.msra.mxu0 0.0
    %1181 = vmatprep.subr.mxu0 0.0
    %1182 = vmatpush1.msra.mxu0 0.0
    %1183 = vmatprep.subr.mxu0 0.0
    %1184 = vmatpush1.msra.mxu0 0.0
    %1185 = vmatprep.subr.mxu0 0.0
    %1186 = vmatpush1.msra.mxu0 0.0
    %1187 = vmatprep.subr.mxu0 0.0
    %1188 = vmatpush1.msra.mxu0 0.0
    %1189 = vmatprep.subr.mxu0 0.0
    %1190 = vmatpush1.msra.mxu0 0.0
    %1191 = vmatprep.subr.mxu0 0.0
    %1192 = vmatpush1.msra.mxu0 0.0
    %1193 = vmatprep.subr.mxu0 0.0
    %1194 = vmatpush1.msra.mxu0 0.0
    %1195 = vmatprep.subr.mxu0 0.0
    %1196 = vmatpush1.msra.mxu0 0.0
    %1197 = vmatprep.mubr.f32.mxu0 0.0
    %1198 = vmatmul.mubr.f32.gmra.mrb[0].mxu0 %v1122
    %v1199 = vpop.f32.mrb[0].mxu0
    %v1200 = vadd.f32 0.0, %v1199
    %v1201 = vpop.f32.mrb[0].mxu0
    %1202 = vmatprep.mubr.f32.mxu0 0.0
    %1203 = vmatmul.mubr.f32.gmra.mrb[0].mxu0 %v1125
    %v1204 = vpop.f32.mrb[0].mxu0
    %v1205 = vadd.f32 0.0, %v1204
    %v1206 = vpop.f32.mrb[0].mxu0
    %1207 = vmatprep.mubr.f32.mxu0 0.0
    %1208 = vmatmul.mubr.f32.gmra.mrb[0].mxu0 %v1128
    %v1209 = vpop.f32.mrb[0].mxu0
    %v1210 = vadd.f32 0.0, %v1209
    %v1211 = vpop.f32.mrb[0].mxu0
    %1212 = vmatprep.mubr.f32.mxu0 0.0
    %1213 = vmatmul.mubr.f32.gmra.mrb[0].mxu0 %v1131
    %v1214 = vpop.f32.mrb[0].mxu0
    %v1215 = vadd.f32 0.0, %v1214
    %v1216 = vpop.f32.mrb[0].mxu0
    %1217 = vdwg.mxu0
    %1219 = vrot.lane.b32.xlu0 %v1205, 8
    %v1220 = vpop.permute.xlu0 %1219
    %1223 = vrot.lane.b32.xlu0 %v1210, 16
    %v1224 = vpop.permute.xlu0 %1223
    %1227 = vrot.lane.b32.xlu0 %v1215, 24
    %v1228 = vpop.permute.xlu0 %1227
    %v1230 = vsel %vm321, %v1200, %v1220
    %v1231 = vsel %vm589, %v1230, %v1224
    %v1232 = vsel %vm591, %v1231, %v1228
    %v1234 = vsel %vm232, %v1232, 0
    %1236 = vmatprep.subr.mxu0 0.0
    %1237 = vmatpush1.msra.mxu0 %v853
    %1238 = vmatprep.subr.mxu0 0.0
    %1239 = vmatpush1.msra.mxu0 %v854
    %1240 = vmatprep.subr.mxu0 0.0
    %1241 = vmatpush1.msra.mxu0 %v855
    %1242 = vmatprep.subr.mxu0 0.0
    %1243 = vmatpush1.msra.mxu0 %v856
    %1244 = vmatprep.subr.mxu0 0.0
    %1245 = vmatpush1.msra.mxu0 0.0
    %1246 = vmatprep.subr.mxu0 0.0
    %1247 = vmatpush1.msra.mxu0 0.0
    %1248 = vmatprep.subr.mxu0 0.0
    %1249 = vmatpush1.msra.mxu0 0.0
    %1250 = vmatprep.subr.mxu0 0.0
    %1251 = vmatpush1.msra.mxu0 0.0
    %1252 = vmatprep.subr.mxu0 0.0
    %1253 = vmatpush1.msra.mxu0 0.0
    %1254 = vmatprep.subr.mxu0 0.0
    %1255 = vmatpush1.msra.mxu0 0.0
    %1256 = vmatprep.subr.mxu0 0.0
    %1257 = vmatpush1.msra.mxu0 0.0
    %1258 = vmatprep.subr.mxu0 0.0
    %1259 = vmatpush1.msra.mxu0 0.0
    %1260 = vmatprep.subr.mxu0 0.0
    %1261 = vmatpush1.msra.mxu0 0.0
    %1262 = vmatprep.subr.mxu0 0.0
    %1263 = vmatpush1.msra.mxu0 0.0
    %1264 = vmatprep.subr.mxu0 0.0
    %1265 = vmatpush1.msra.mxu0 0.0
    %1266 = vmatprep.subr.mxu0 0.0
    %1267 = vmatpush1.msra.mxu0 0.0
    %1268 = vmatprep.subr.mxu0 0.0
    %1269 = vmatpush1.msra.mxu0 0.0
    %1270 = vmatprep.subr.mxu0 0.0
    %1271 = vmatpush1.msra.mxu0 0.0
    %1272 = vmatprep.subr.mxu0 0.0
    %1273 = vmatpush1.msra.mxu0 0.0
    %1274 = vmatprep.subr.mxu0 0.0
    %1275 = vmatpush1.msra.mxu0 0.0
    %1276 = vmatprep.subr.mxu0 0.0
    %1277 = vmatpush1.msra.mxu0 0.0
    %1278 = vmatprep.subr.mxu0 0.0
    %1279 = vmatpush1.msra.mxu0 0.0
    %1280 = vmatprep.subr.mxu0 0.0
    %1281 = vmatpush1.msra.mxu0 0.0
    %1282 = vmatprep.subr.mxu0 0.0
    %1283 = vmatpush1.msra.mxu0 0.0
    %1284 = vmatprep.subr.mxu0 0.0
    %1285 = vmatpush1.msra.mxu0 0.0
    %1286 = vmatprep.subr.mxu0 0.0
    %1287 = vmatpush1.msra.mxu0 0.0
    %1288 = vmatprep.subr.mxu0 0.0
    %1289 = vmatpush1.msra.mxu0 0.0
    %1290 = vmatprep.subr.mxu0 0.0
    %1291 = vmatpush1.msra.mxu0 0.0
    %1292 = vmatprep.subr.mxu0 0.0
    %1293 = vmatpush1.msra.mxu0 0.0
    %1294 = vmatprep.subr.mxu0 0.0
    %1295 = vmatpush1.msra.mxu0 0.0
    %1296 = vmatprep.subr.mxu0 0.0
    %1297 = vmatpush1.msra.mxu0 0.0
    %1298 = vmatprep.subr.mxu0 0.0
    %1299 = vmatpush1.msra.mxu0 0.0
    %1300 = vmatprep.mubr.f32.mxu0 0.0
    %1301 = vmatmul.mubr.f32.gmra.mrb[0].mxu0 %v1234
    %v1302 = vpop.f32.mrb[0].mxu0
    %v1303 = vadd.f32 %v873, %v1302
    %v1304 = vpop.f32.mrb[0].mxu0
    %1305 = vdwg.mxu0
    %v1306 = vadd.f32 %v1303, %v846
    %v1307 = vsel %vm232, %v1306, 0.0
    %1308 = vadd.xlane.f32.xlu0 %v1307
    %v1309 = vpop.xlane.xlu0 %1308
    %v1310 = vmul.f32 %v1309, %v670
    %v1311 = vsub.f32 %v1306, %v1310
    %v1312 = vmul.f32 %v1311, %v1311
    %v1313 = vsel %vm232, %v1312, 0.0
    %1314 = vadd.xlane.f32.xlu0 %v1313
    %v1315 = vpop.xlane.xlu0 %1314
    %v1316 = vmul.f32 %v1315, %v670
    %v1317 = vadd.f32 %v1316, 1e-05
    %v1318 = vrsqrt.pop %v1317
    %v1319 = vmul.f32 %v1311, %v1318
    %v1321 = vsel %vm232, %v1319, 0
    %1323 = vmatprep.subr.mxu0 0.0
    %1324 = vmatpush1.msra.mxu0 %v858
    %1325 = vmatprep.subr.mxu0 0.0
    %1326 = vmatpush1.msra.mxu0 %v859
    %1327 = vmatprep.subr.mxu0 0.0
    %1328 = vmatpush1.msra.mxu0 %v860
    %1329 = vmatprep.subr.mxu0 0.0
    %1330 = vmatpush1.msra.mxu0 %v861
    %1331 = vmatprep.subr.mxu0 0.0
    %1332 = vmatpush1.msra.mxu0 0.0
    %1333 = vmatprep.subr.mxu0 0.0
    %1334 = vmatpush1.msra.mxu0 0.0
    %1335 = vmatprep.subr.mxu0 0.0
    %1336 = vmatpush1.msra.mxu0 0.0
    %1337 = vmatprep.subr.mxu0 0.0
    %1338 = vmatpush1.msra.mxu0 0.0
    %1339 = vmatprep.subr.mxu0 0.0
    %1340 = vmatpush1.msra.mxu0 0.0
    %1341 = vmatprep.subr.mxu0 0.0
    %1342 = vmatpush1.msra.mxu0 0.0
    %1343 = vmatprep.subr.mxu0 0.0
    %1344 = vmatpush1.msra.mxu0 0.0
    %1345 = vmatprep.subr.mxu0 0.0
    %1346 = vmatpush1.msra.mxu0 0.0
    %1347 = vmatprep.subr.mxu0 0.0
    %1348 = vmatpush1.msra.mxu0 0.0
    %1349 = vmatprep.subr.mxu0 0.0
    %1350 = vmatpush1.msra.mxu0 0.0
    %1351 = vmatprep.subr.mxu0 0.0
    %1352 = vmatpush1.msra.mxu0 0.0
    %1353 = vmatprep.subr.mxu0 0.0
    %1354 = vmatpush1.msra.mxu0 0.0
    %1355 = vmatprep.subr.mxu0 0.0
    %1356 = vmatpush1.msra.mxu0 0.0
    %1357 = vmatprep.subr.mxu0 0.0
    %1358 = vmatpush1.msra.mxu0 0.0
    %1359 = vmatprep.subr.mxu0 0.0
    %1360 = vmatpush1.msra.mxu0 0.0
    %1361 = vmatprep.subr.mxu0 0.0
    %1362 = vmatpush1.msra.mxu0 0.0
    %1363 = vmatprep.subr.mxu0 0.0
    %1364 = vmatpush1.msra.mxu0 0.0
    %1365 = vmatprep.subr.mxu0 0.0
    %1366 = vmatpush1.msra.mxu0 0.0
    %1367 = vmatprep.subr.mxu0 0.0
    %1368 = vmatpush1.msra.mxu0 0.0
    %1369 = vmatprep.subr.mxu0 0.0
    %1370 = vmatpush1.msra.mxu0 0.0
    %1371 = vmatprep.subr.mxu0 0.0
    %1372 = vmatpush1.msra.mxu0 0.0
    %1373 = vmatprep.subr.mxu0 0.0
    %1374 = vmatpush1.msra.mxu0 0.0
    %1375 = vmatprep.subr.mxu0 0.0
    %1376 = vmatpush1.msra.mxu0 0.0
    %1377 = vmatprep.subr.mxu0 0.0
    %1378 = vmatpush1.msra.mxu0 0.0
    %1379 = vmatprep.subr.mxu0 0.0
    %1380 = vmatpush1.msra.mxu0 0.0
    %1381 = vmatprep.subr.mxu0 0.0
    %1382 = vmatpush1.msra.mxu0 0.0
    %1383 = vmatprep.subr.mxu0 0.0
    %1384 = vmatpush1.msra.mxu0 0.0
    %1385 = vmatprep.subr.mxu0 0.0
    %1386 = vmatpush1.msra.mxu0 0.0
    %1387 = vmatprep.mubr.f32.mxu0 0.0
    %1388 = vmatmul.mubr.f32.gmra.mrb[0].mxu0 %v1321
    %v1389 = vpop.f32.mrb[0].mxu0
    %v1390 = vadd.f32 %v874, %v1389
    %v1391 = vpop.f32.mrb[0].mxu0
    %1392 = vdwg.mxu0
    %v1393 = vmul.f32 %v1390, 0.5
    %v1394 = vmul.f32 %v1390, 0.70710677
    %v1395 = verf.f32.pop %v1394
    %v1396 = vadd.f32 %v1395, 1.0
    %v1397 = vmul.f32 %v1393, %v1396
    %v1399 = vsel %vm759, %v1397, 0
    %1401 = vmatprep.subr.mxu0 0.0
    %1402 = vmatpush1.msra.mxu0 %v863
    %1403 = vmatprep.subr.mxu0 0.0
    %1404 = vmatpush1.msra.mxu0 %v864
    %1405 = vmatprep.subr.mxu0 0.0
    %1406 = vmatpush1.msra.mxu0 %v865
    %1407 = vmatprep.subr.mxu0 0.0
    %1408 = vmatpush1.msra.mxu0 %v866
    %1409 = vmatprep.subr.mxu0 0.0
    %1410 = vmatpush1.msra.mxu0 %v867
    %1411 = vmatprep.subr.mxu0 0.0
    %1412 = vmatpush1.msra.mxu0 %v868
    %1413 = vmatprep.subr.mxu0 0.0
    %1414 = vmatpush1.msra.mxu0 %v869
    %1415 = vmatprep.subr.mxu0 0.0
    %1416 = vmatpush1.msra.mxu0 %v870
    %1417 = vmatprep.subr.mxu0 0.0
    %1418 = vmatpush1.msra.mxu0 0.0
    %1419 = vmatprep.subr.mxu0 0.0
    %1420 = vmatpush1.msra.mxu0 0.0
    %1421 = vmatprep.subr.mxu0 0.0
    %1422 = vmatpush1.msra.mxu0 0.0
    %1423 = vmatprep.subr.mxu0 0.0
    %1424 = vmatpush1.msra.mxu0 0.0
    %1425 = vmatprep.subr.mxu0 0.0
    %1426 = vmatpush1.msra.mxu0 0.0
    %1427 = vmatprep.subr.mxu0 0.0
    %1428 = vmatpush1.msra.mxu0 0.0
    %1429 = vmatprep.subr.mxu0 0.0
    %1430 = vmatpush1.msra.mxu0 0.0
    %1431 = vmatprep.subr.mxu0 0.0
    %1432 = vmatpush1.msra.mxu0 0.0
    %1433 = vmatprep.subr.mxu0 0.0
    %1434 = vmatpush1.msra.mxu0 0.0
    %1435 = vmatprep.subr.mxu0 0.0
    %1436 = vmatpush1.msra.mxu0 0.0
    %1437 = vmatprep.subr.mxu0 0.0
    %1438 = vmatpush1.msra.mxu0 0.0
    %1439 = vmatprep.subr.mxu0 0.0
    %1440 = vmatpush1.msra.mxu0 0.0
    %1441 = vmatprep.subr.mxu0 0.0
    %1442 = vmatpush1.msra.mxu0 0.0
    %1443 = vmatprep.subr.mxu0 0.0
    %1444 = vmatpush1.msra.mxu0 0.0
    %1445 = vmatprep.subr.mxu0 0.0
    %1446 = vmatpush1.msra.mxu0 0.0
    %1447 = vmatprep.subr.mxu0 0.0
    %1448 = vmatpush1.msra.mxu0 0.0
    %1449 = vmatprep.subr.mxu0 0.0
    %1450 = vmatpush1.msra.mxu0 0.0
    %1451 = vmatprep.subr.mxu0 0.0
    %1452 = vmatpush1.msra.mxu0 0.0
    %1453 = vmatprep.subr.mxu0 0.0
    %1454 = vmatpush1.msra.mxu0 0.0
    %1455 = vmatprep.subr.mxu0 0.0
    %1456 = vmatpush1.msra.mxu0 0.0
    %1457 = vmatprep.subr.mxu0 0.0
    %1458 = vmatpush1.msra.mxu0 0.0
    %1459 = vmatprep.subr.mxu0 0.0
    %1460 = vmatpush1.msra.mxu0 0.0
    %1461 = vmatprep.subr.mxu0 0.0
    %1462 = vmatpush1.msra.mxu0 0.0
    %1463 = vmatprep.subr.mxu0 0.0
    %1464 = vmatpush1.msra.mxu0 0.0
    %1465 = vmatprep.mubr.f32.mxu0 0.0
    %1466 = vmatmul.mubr.f32.gmra.mrb[0].mxu0 %v1399
    %v1467 = vpop.f32.mrb[0].mxu0
    %v1468 = vadd.f32 %v875, %v1467
    %v1469 = vpop.f32.mrb[0].mxu0
    %1470 = vdwg.mxu0
    %v1471 = vadd.f32 %v1319, %v1468
    %v1472 = vsel %vm232, %v1471, 0.0
    %1473 = vadd.xlane.f32.xlu0 %v1472
    %v1474 = vpop.xlane.xlu0 %1473
    %v1475 = vmul.f32 %v1474, %v670
    %v1476 = vsub.f32 %v1471, %v1475
    %v1477 = vmul.f32 %v1476, %v1476
    %v1478 = vsel %vm232, %v1477, 0.0
    %1479 = vadd.xlane.f32.xlu0 %v1478
    %v1480 = vpop.xlane.xlu0 %1479
    %v1481 = vmul.f32 %v1480, %v670
    %v1482 = vadd.f32 %v1481, 1e-05
    %v1483 = vrsqrt.pop %v1482
    %v1484 = vmul.f32 %v1476, %v1483
    %1485 = vst.msk [vmem:[#allocation9] sm:$0xff] %vm232, %v1484
    // Predicated region
    $region34: #{encoder_forward.1} parent=1 // pred_check
      _
    $region35: #{encoder_forward.1} parent=1 // pred_check_branch
      %1487 = sbr.rel (0) target = $region37
    $region36: #{encoder_forward.1} parent=1 // pred_region
      %s1489 = ssub.s32 128, 128
      %1490 = vsyncadd [#allocation8], %s1489
      %s1492 = sshll.u32 [#allocation9], 4
      %s1493 = int_to_ptr.vmem [resolvable:$true] %s1492
      %1495 = dma.vmem_to_hbm [thread:$0]  %s1493, 128, %s9, [#allocation8]
    $region37: #{encoder_forward.1} parent=1 // pred_fallthru
      _
    // Predicated region
    $region38: #{encoder_forward.1} parent=1 // pred_check
      _
    $region39: #{encoder_forward.1} parent=1 // pred_check_branch
      %1497 = sbr.rel (0) target = $region41
    $region40: #{encoder_forward.1} parent=1 // pred_region
      %1498 = dma.done [#allocation8], 128
    $region41: #{encoder_forward.1} parent=1 // pred_fallthru
      _
    %1499 = vsyncpa [#allocation7], 1
    %1500 = vsyncpa [#allocation8], 1

</llo_original>
